<compile_context>
chip_gen: v7x
topology: tpu7x:2x2x1
jax: 0.10.0
libtpu: 0.0.40
codegen_flags: <defaults>
</compile_context>

<pallas_src>
import functools

import numpy as np
import jax
import jax.numpy as jnp
from jax.experimental import pallas as pl
from jax.experimental.pallas import tpu as pltpu


# ------------------------------ small helpers -------------------------------

def _round_up(x, m):
    return ((x + m - 1) // m) * m


def _pick_tm(n):
    """Destination-row tile: multiple of 128 (lane + int8-sublane friendly)."""
    for tm in (256, 128):
        if n % tm == 0:
            return tm
    return n          # small / odd graphs: single tile (block == full array)


def _vmem_capacity_bytes():
    try:
        info = pltpu.get_tpu_info()
        cap = getattr(info, "vmem_capacity_bytes", None)
        if cap:
            return int(cap)
    except Exception:
        pass
    return 64 * 1024 * 1024          # conservative (v7x-sized) fallback


def _vmem_limit_bytes(n, tm, f_in, c_src, c_dst, hp, hf, agg_cols, num_heads,
                      out_esize):
    bf = 2
    resident = (
        2 * n * f_in * bf                       # h (full block, bf16)
        + 2 * f_in * n * bf                     # h^T
        + 2 * tm * n                            # adjacency tile (int8, 2 bufs)
        + 2 * f_in * (c_src + c_dst) * bf       # fused weights
        + 2 * hp * f_in * bf                    # folded attn_l rows
        + 2 * tm * hf * out_esize               # output tile
        + 4 * n * c_src + 4 * tm * c_dst        # hw_src / hw_dst (f32)
        + n * hf * bf                           # feat_bf
        + n * num_heads * agg_cols * bf         # aggregation RHS
        + 4 * hp * n                            # el rows
        + 4 * tm * n * 4                        # e / masked / p + slack (f32)
        + 4 * tm * agg_cols + 4 * tm * hf)      # agg / out temporaries
    est = 2 * resident + (4 << 20)
    cap = _vmem_capacity_bytes()
    ceiling = (48 << 20) if cap <= (64 << 20) else (56 << 20)
    return int(min(max(est, 16 << 20), ceiling))


# ----------------------------- Pallas kernel --------------------------------

def _gat_layer_kernel(h_ref, ht_ref, adj_ref, wsrc_ref, wdst_ref, wl_ref,
                      out_ref, *, num_heads, f_out, hf, er_off, agg_cols,
                      residual, apply_elu, negative_slope):
    # ---- source-side fused matmul: feat columns for all N nodes ----
    hb = h_ref[...].astype(jnp.bfloat16)                          # (N, F_in)
    hw_src = jnp.dot(hb, wsrc_ref[...],
                     preferred_element_type=jnp.float32)          # (N, C_src)
    feat_bf = hw_src[:, :hf].astype(jnp.bfloat16)                 # hoisted cast

    # ---- el for all heads: one lane-dense MXU dispatch (Hp, N) ----
    el_rows = jnp.dot(wl_ref[...], ht_ref[...].astype(jnp.bfloat16),
                      preferred_element_type=jnp.float32)

    # ---- destination-row slab of this grid step ----
    tm = adj_ref.shape[0]
    row0 = pl.multiple_of(pl.program_id(0) * tm, tm)
    hb_dst = h_ref[pl.ds(row0, tm), :].astype(jnp.bfloat16)       # (TM, F_in)
    hw_dst = jnp.dot(hb_dst, wdst_ref[...],
                     preferred_element_type=jnp.float32)          # (TM, C_dst)

    mask = adj_ref[...] != 0                                      # (TM, N)

    # ---- aggregation RHS: per head [feat_h | 1 | pad] so the MXU also
    #      produces the softmax denominator with f32 accumulation ----
    n_src = feat_bf.shape[0]
    ones_blk = jnp.ones((n_src, agg_cols - f_out), jnp.bfloat16)
    rhs_parts = []
    for hd in range(num_heads):
        rhs_parts.append(feat_bf[:, hd * f_out:(hd + 1) * f_out])
        rhs_parts.append(ones_blk)
    rhs_all = jnp.concatenate(rhs_parts, axis=1)                  # (N, H*agg_cols)

    parts = []
    for hd in range(num_heads):                                   # static unroll
        er_col = hw_dst[:, er_off + hd:er_off + hd + 1]           # (TM, 1)
        el_row = el_rows[hd:hd + 1, :]                            # (1, N)

        # e[dst, src] = leaky_relu(el[src] + er[dst]); masked edge-softmax
        e = er_col + el_row                                       # (TM, N)
        e = jnp.maximum(e, negative_slope * e)                    # leaky relu
        masked = jnp.where(mask, e, jnp.float32(-1e30))
        m = jnp.max(masked, axis=1, keepdims=True)                # (TM, 1)
        p_bf = jnp.exp(masked - m).astype(jnp.bfloat16)           # unnormalized

        # aggregate + denominator in one bf16 MXU matmul (f32 accumulation)
        agg = jnp.dot(p_bf, rhs_all[:, hd * agg_cols:(hd + 1) * agg_cols],
                      preferred_element_type=jnp.float32)         # (TM, agg_cols)
        denom = agg[:, f_out:f_out + 1]                           # (TM, 1)
        rst = agg[:, :f_out] * pl.reciprocal(denom, approx=True)

        if residual:
            rst = rst + hw_dst[:, hd * f_out:(hd + 1) * f_out]
        if apply_elu:
            rst = jnp.where(rst > 0, rst, jnp.exp(rst) - 1.0)
        parts.append(rst)

    out = parts[0] if num_heads == 1 else jnp.concatenate(parts, axis=1)
    out_ref[...] = out.astype(out_ref.dtype)                      # dense store


# ------------------------ weight packing (host side) ------------------------

def pack_gat_layer(w, attn_l, attn_r, w_res):
    """Fold attention vectors into the weights (f32) and pack for the kernel.

    Returns bf16 arrays:
      w_src  (F_in, C_src): [feat columns (H*F_out) | zero pad to 128-mult]
      w_dst  (F_in, C_dst): [res columns (H*F_out) if residual | wr cols (H) | pad]
      wl_pad (Hp,  F_in)  : per-head W_h @ attn_l_h rows, sublane-padded to 8
    """
    H, f_in, f_out = w.shape
    hf = H * f_out

    w_feat = jnp.transpose(w, (1, 0, 2)).reshape(f_in, hf)          # (F_in, hf)
    c_src = _round_up(hf, 128)
    w_src = jnp.zeros((f_in, c_src), jnp.float32).at[:, :hf].set(w_feat)

    wr = jnp.einsum("hio,ho->ih", w, attn_r)                        # (F_in, H)
    blocks = []
    if w_res is not None:
        blocks.append(jnp.transpose(w_res, (1, 0, 2)).reshape(f_in, hf))
        er_off = hf
    else:
        er_off = 0
    blocks.append(wr)
    w_dst_raw = jnp.concatenate(blocks, axis=1)
    c_dst = _round_up(w_dst_raw.shape[1], 128)
    w_dst = jnp.zeros((f_in, c_dst), jnp.float32).at[
        :, :w_dst_raw.shape[1]].set(w_dst_raw)

    wl = jnp.einsum("hio,ho->hi", w, attn_l)                        # (H, F_in)
    hp = max(8, _round_up(H, 8))
    wl_pad = jnp.zeros((hp, f_in), jnp.float32).at[:H, :].set(wl)

    packed = (w_src.astype(jnp.bfloat16), w_dst.astype(jnp.bfloat16),
              wl_pad.astype(jnp.bfloat16))
    meta = dict(num_heads=H, f_out=f_out, hf=hf, er_off=er_off,
                residual=w_res is not None, c_src=c_src, c_dst=c_dst, hp=hp)
    return packed, meta


# ------------------------------ layer wrapper --------------------------------

def gat_conv(h, adj_mask, packed, meta, *, negative_slope=0.2, apply_elu=True,
             out_dtype=jnp.bfloat16):
    """One GATConv layer. Returns (N, H*F_out) in head-major 'flatten(1)' layout."""
    w_src, w_dst, wl_pad = packed
    N, f_in = h.shape
    H, f_out, hf = meta["num_heads"], meta["f_out"], meta["hf"]
    c_src, c_dst, hp = meta["c_src"], meta["c_dst"], meta["hp"]
    residual, er_off = meta["residual"], meta["er_off"]
    agg_cols = _round_up(f_out + 1, 128)

    tm = _pick_tm(N)
    grid = (N // tm,)

    h_bf = h.astype(jnp.bfloat16)
    ht_bf = jnp.transpose(h_bf)                                   # (F_in, N)

    kernel = functools.partial(
        _gat_layer_kernel, num_heads=H, f_out=f_out, hf=hf, er_off=er_off,
        agg_cols=agg_cols, residual=residual, apply_elu=apply_elu,
        negative_slope=negative_slope)

    out_esize = jnp.dtype(out_dtype).itemsize
    vmem_limit = _vmem_limit_bytes(N, tm, f_in, c_src, c_dst, hp, hf, agg_cols,
                                   H, out_esize)

    return pl.pallas_call(
        kernel,
        out_shape=jax.ShapeDtypeStruct((N, hf), out_dtype),
        grid_spec=pltpu.PrefetchScalarGridSpec(
            num_scalar_prefetch=0,
            grid=grid,
            in_specs=[
                pl.BlockSpec((N, f_in), lambda i: (0, 0)),       # h (all src rows)
                pl.BlockSpec((f_in, N), lambda i: (0, 0)),       # h^T (el matmul RHS)
                pl.BlockSpec((tm, N), lambda i: (i, 0)),         # adjacency dst tile
                pl.BlockSpec((f_in, c_src), lambda i: (0, 0)),   # [feat|pad] weights
                pl.BlockSpec((f_in, c_dst), lambda i: (0, 0)),   # [res|er|pad] weights
                pl.BlockSpec((hp, f_in), lambda i: (0, 0)),      # folded attn_l rows
            ],
            out_specs=pl.BlockSpec((tm, hf), lambda i: (i, 0)),
        ),
        compiler_params=pltpu.CompilerParams(
            dimension_semantics=("parallel",),
            vmem_limit_bytes=vmem_limit),
    )(h_bf, ht_bf, adj_mask, w_src, w_dst, wl_pad)


# ------------------------- parameter init & model ---------------------------

def init_gat_params(key, num_layers, in_dim, num_hidden, num_classes, heads):
    """Deterministic synthetic parameters matching the GAT module's shapes."""
    params = []
    dims = []
    dims.append((in_dim, num_hidden, heads[0], False))
    for l in range(1, num_layers):
        dims.append((num_hidden * heads[l - 1], num_hidden, heads[l], True))
    dims.append((num_hidden * heads[-2], num_classes, heads[-1], True))

    for (f_in, f_out, H, residual) in dims:
        key, k1, k2, k3, k4 = jax.random.split(key, 5)
        layer = {
            "w": 0.1 * jax.random.normal(k1, (H, f_in, f_out), jnp.float32),
            "attn_l": 0.1 * jax.random.normal(k2, (H, f_out), jnp.float32),
            "attn_r": 0.1 * jax.random.normal(k3, (H, f_out), jnp.float32),
            "w_res": (0.1 * jax.random.normal(k4, (H, f_in, f_out), jnp.float32)
                      if residual else None),
        }
        params.append(layer)
    return params


def gat_forward(params, adj_mask, inputs, negative_slope=0.2):
    h = inputs
    for lp in params[:-1]:                      # hidden GATConv layers (elu)
        packed, meta = pack_gat_layer(lp["w"], lp["attn_l"], lp["attn_r"],
                                      lp["w_res"])
        h = gat_conv(h, adj_mask, packed, meta, negative_slope=negative_slope,
                     apply_elu=True, out_dtype=jnp.bfloat16)
    lp = params[-1]                             # output layer: no act, mean heads
    packed, meta = pack_gat_layer(lp["w"], lp["attn_l"], lp["attn_r"],
                                  lp["w_res"])
    o = gat_conv(h, adj_mask, packed, meta, negative_slope=negative_slope,
                 apply_elu=False, out_dtype=jnp.float32)          # (N, H*C)
    H, C = meta["num_heads"], meta["f_out"]
    return o.reshape(o.shape[0], H, C).mean(axis=1)               # (N, C)


# --------------------------- pure-JAX reference ------------------------------
# Mirrors the kernel's mixed-precision policy (bf16 MXU operands, folded
# attention weights, f32 softmax) with an exact division for the softmax.

def _ref_gat_layer(h_bf, adj, packed, meta, negative_slope, apply_elu, out_dtype):
    w_src, w_dst, wl_pad = packed
    H, f_out, hf = meta["num_heads"], meta["f_out"], meta["hf"]
    er_off, residual = meta["er_off"], meta["residual"]

    hw_src = jnp.dot(h_bf, w_src, preferred_element_type=jnp.float32)
    feat_bf = hw_src[:, :hf].astype(jnp.bfloat16)
    el = jnp.dot(wl_pad, h_bf.T, preferred_element_type=jnp.float32)   # (Hp, N)
    hw_dst = jnp.dot(h_bf, w_dst, preferred_element_type=jnp.float32)
    mask = adj != 0

    outs = []
    for hd in range(H):
        e = hw_dst[:, er_off + hd:er_off + hd + 1] + el[hd:hd + 1, :]
        e = jnp.maximum(e, negative_slope * e)
        masked = jnp.where(mask, e, -1e30)
        m = masked.max(axis=1, keepdims=True)
        p_bf = jnp.exp(masked - m).astype(jnp.bfloat16)
        num = jnp.dot(p_bf, feat_bf[:, hd * f_out:(hd + 1) * f_out],
                      preferred_element_type=jnp.float32)
        denom = jnp.sum(p_bf.astype(jnp.float32), axis=1, keepdims=True)
        rst = num / denom
        if residual:
            rst = rst + hw_dst[:, hd * f_out:(hd + 1) * f_out]
        if apply_elu:
            rst = jnp.where(rst > 0, rst, jnp.exp(rst) - 1.0)
        outs.append(rst)
    o = outs[0] if H == 1 else jnp.concatenate(outs, axis=1)
    return o.astype(out_dtype)


def ref_gat_forward(params, adj, inputs, negative_slope=0.2):
    h = inputs
    for lp in params[:-1]:
        packed, meta = pack_gat_layer(lp["w"], lp["attn_l"], lp["attn_r"],
                                      lp["w_res"])
        h = _ref_gat_layer(h.astype(jnp.bfloat16), adj, packed, meta,
                           negative_slope, True, jnp.bfloat16)
    lp = params[-1]
    packed, meta = pack_gat_layer(lp["w"], lp["attn_l"], lp["attn_r"],
                                  lp["w_res"])
    o = _ref_gat_layer(h.astype(jnp.bfloat16), adj, packed, meta,
                       negative_slope, False, jnp.float32)
    H, C = meta["num_heads"], meta["f_out"]
    return o.reshape(o.shape[0], H, C).mean(axis=1)


# ----------------------------------- main ------------------------------------

if __name__ == "__main__":
    # Small GAT: 1 hidden GATConv layer + output GATConv layer.
    # Sizes chosen so the fused-head dims are (8,128)-aligned (vreg friendly).
    num_layers = 1
    N = 128              # number of graph nodes
    in_dim = 64
    num_hidden = 64      # per-head hidden size; H*num_hidden = 128 (lane-dense)
    num_classes = 8
    heads = [2, 2]
    negative_slope = 0.2

    key = jax.random.PRNGKey(0)
    k_feat, k_adj, k_params = jax.random.split(key, 3)

    # deterministic random graph + self loops; adj[dst, src] in {0, 1}, int8
    adj = (jax.random.uniform(k_adj, (N, N)) < 0.1).astype(jnp.float32)
    adj = jnp.maximum(adj, jnp.eye(N, dtype=jnp.float32))
    adj_mask = adj.astype(jnp.int8)

    inputs = jax.random.normal(k_feat, (N, in_dim), jnp.float32)
    params = init_gat_params(k_params, num_layers, in_dim, num_hidden,
                             num_classes, heads)

    logits = jax.block_until_ready(gat_forward(params, adj_mask, inputs,
                                               negative_slope))
    ref = jax.block_until_ready(ref_gat_forward(params, adj_mask, inputs,
                                                negative_slope))
    # Tolerance covers the EUP approximate-reciprocal softmax normalization
    # and MXU accumulation-order differences.
    np.testing.assert_allclose(np.asarray(logits), np.asarray(ref),
                               rtol=5e-3, atol=5e-3)
    assert logits.shape == (N, num_classes)
    print("KERNEL_OK")
</pallas_src>

<mosaic_0001>
module attributes {stable_mosaic.version = 11 : i64} {
  func.func @_gat_layer_kernel(%arg0: i32, %arg1: memref<128x64xbf16, #tpu.memory_space<vmem>>, %arg2: memref<64x128xbf16, #tpu.memory_space<vmem>>, %arg3: memref<128x128xi8, #tpu.memory_space<vmem>>, %arg4: memref<64x128xbf16, #tpu.memory_space<vmem>>, %arg5: memref<64x128xbf16, #tpu.memory_space<vmem>>, %arg6: memref<8x64xbf16, #tpu.memory_space<vmem>>, %arg7: memref<128x128xbf16, #tpu.memory_space<vmem>>) attributes {dimension_semantics = [#tpu.dimension_semantics<parallel>], iteration_bounds = array<i64: 1>, scalar_prefetch = 0 : i64, scratch_operands = 0 : i64, tpu.core_type = #tpu.core_type<tc>, window_params = [{pipeline_mode = #tpu.pipeline_mode<synchronous>, transform_indices = @transform_0, window_bounds = array<i64: 128, 64>}, {pipeline_mode = #tpu.pipeline_mode<synchronous>, transform_indices = @transform_1, window_bounds = array<i64: 64, 128>}, {transform_indices = @transform_2, window_bounds = array<i64: 128, 128>}, {pipeline_mode = #tpu.pipeline_mode<synchronous>, transform_indices = @transform_3, window_bounds = array<i64: 64, 128>}, {pipeline_mode = #tpu.pipeline_mode<synchronous>, transform_indices = @transform_4, window_bounds = array<i64: 64, 128>}, {pipeline_mode = #tpu.pipeline_mode<synchronous>, transform_indices = @transform_5, window_bounds = array<i64: 8, 64>}, {transform_indices = @transform_6, window_bounds = array<i64: 128, 128>}]} {
    %c0 = arith.constant 0 : index
    %c0_0 = arith.constant 0 : index
    %0 = vector.load %arg1[%c0, %c0_0] : memref<128x64xbf16, #tpu.memory_space<vmem>>, vector<128x64xbf16>
    %c0_1 = arith.constant 0 : index
    %c0_2 = arith.constant 0 : index
    %1 = vector.load %arg4[%c0_1, %c0_2] : memref<64x128xbf16, #tpu.memory_space<vmem>>, vector<64x128xbf16>
    %cst = arith.constant dense<0.000000e+00> : vector<128x128xf32>
    %2 = tpu.matmul %0, %1, %cst {dimension_numbers = #tpu.dot_dimension_numbers<[1], [0], [0], [1], [0, 0, 1, 1], [], []>} : vector<128x64xbf16>, vector<64x128xbf16>, vector<128x128xf32> -> vector<128x128xf32>
    %3 = arith.truncf %2 : vector<128x128xf32> to vector<128x128xbf16>
    %c0_3 = arith.constant 0 : index
    %c0_4 = arith.constant 0 : index
    %4 = vector.load %arg6[%c0_3, %c0_4] : memref<8x64xbf16, #tpu.memory_space<vmem>>, vector<8x64xbf16>
    %c0_5 = arith.constant 0 : index
    %c0_6 = arith.constant 0 : index
    %5 = vector.load %arg2[%c0_5, %c0_6] : memref<64x128xbf16, #tpu.memory_space<vmem>>, vector<64x128xbf16>
    %cst_7 = arith.constant dense<0.000000e+00> : vector<8x128xf32>
    %6 = tpu.matmul %4, %5, %cst_7 {dimension_numbers = #tpu.dot_dimension_numbers<[1], [0], [0], [1], [0, 0, 1, 1], [], []>} : vector<8x64xbf16>, vector<64x128xbf16>, vector<8x128xf32> -> vector<8x128xf32>
    %c128_i32 = arith.constant 128 : i32
    %7 = arith.muli %arg0, %c128_i32 : i32
    %8 = tpu.assume_multiple %7, 128 : i32
    %9 = arith.index_cast %8 : i32 to index
    %c0_8 = arith.constant 0 : index
    %10 = vector.load %arg1[%9, %c0_8] : memref<128x64xbf16, #tpu.memory_space<vmem>>, vector<128x64xbf16>
    %c0_9 = arith.constant 0 : index
    %c0_10 = arith.constant 0 : index
    %11 = vector.load %arg5[%c0_9, %c0_10] : memref<64x128xbf16, #tpu.memory_space<vmem>>, vector<64x128xbf16>
    %cst_11 = arith.constant dense<0.000000e+00> : vector<128x128xf32>
    %12 = tpu.matmul %10, %11, %cst_11 {dimension_numbers = #tpu.dot_dimension_numbers<[1], [0], [0], [1], [0, 0, 1, 1], [], []>} : vector<128x64xbf16>, vector<64x128xbf16>, vector<128x128xf32> -> vector<128x128xf32>
    %c0_12 = arith.constant 0 : index
    %c0_13 = arith.constant 0 : index
    %13 = vector.load %arg3[%c0_12, %c0_13] : memref<128x128xi8, #tpu.memory_space<vmem>>, vector<128x128xi8>
    %c0_i8 = arith.constant 0 : i8
    %14 = vector.broadcast %c0_i8 : i8 to vector<128x128xi8>
    %15 = arith.cmpi ne, %13, %14 : vector<128x128xi8>
    %cst_14 = arith.constant 1.000000e+00 : bf16
    %16 = vector.broadcast %cst_14 : bf16 to vector<128x64xbf16>
    %17 = vector.extract_strided_slice %3 {offsets = [0, 0], sizes = [128, 64], strides = [1, 1]} : vector<128x128xbf16> to vector<128x64xbf16>
    %18 = vector.extract_strided_slice %3 {offsets = [0, 64], sizes = [128, 64], strides = [1, 1]} : vector<128x128xbf16> to vector<128x64xbf16>
    %19 = tpu.concatenate %17, %16, %18, %16 in 1 : vector<128x64xbf16>, vector<128x64xbf16>, vector<128x64xbf16>, vector<128x64xbf16> -> vector<128x256xbf16>
    %20 = vector.extract_strided_slice %12 {offsets = [0, 0], sizes = [128, 1], strides = [1, 1]} : vector<128x128xf32> to vector<128x1xf32>
    %21 = vector.extract_strided_slice %6 {offsets = [0, 0], sizes = [1, 128], strides = [1, 1]} : vector<8x128xf32> to vector<1x128xf32>
    %22 = vector.broadcast %20 : vector<128x1xf32> to vector<128x128xf32>
    %23 = vector.broadcast %21 : vector<1x128xf32> to vector<128x128xf32>
    %24 = arith.addf %22, %23 : vector<128x128xf32>
    %cst_15 = arith.constant 2.000000e-01 : f32
    %25 = vector.broadcast %cst_15 : f32 to vector<128x128xf32>
    %26 = arith.mulf %25, %24 : vector<128x128xf32>
    %27 = arith.maximumf %24, %26 : vector<128x128xf32>
    %cst_16 = arith.constant -1.000000e+30 : f32
    %28 = vector.broadcast %cst_16 : f32 to vector<128x128xf32>
    %29 = arith.select %15, %27, %28 : vector<128x128xi1>, vector<128x128xf32>
    %cst_17 = arith.constant dense<0xFF800000> : vector<128xf32>
    %30 = vector.multi_reduction <maximumf>, %29, %cst_17 [1] : vector<128x128xf32> to vector<128xf32>
    %31 = vector.shape_cast %30 : vector<128xf32> to vector<128x1xf32>
    %32 = vector.broadcast %31 : vector<128x1xf32> to vector<128x128xf32>
    %33 = arith.subf %29, %32 : vector<128x128xf32>
    %34 = math.exp %33 : vector<128x128xf32>
    %35 = arith.truncf %34 : vector<128x128xf32> to vector<128x128xbf16>
    %36 = vector.extract_strided_slice %19 {offsets = [0, 0], sizes = [128, 128], strides = [1, 1]} : vector<128x256xbf16> to vector<128x128xbf16>
    %cst_18 = arith.constant dense<0.000000e+00> : vector<128x128xf32>
    %37 = tpu.matmul %35, %36, %cst_18 {dimension_numbers = #tpu.dot_dimension_numbers<[1], [0], [0], [1], [0, 0, 1, 1], [], []>} : vector<128x128xbf16>, vector<128x128xbf16>, vector<128x128xf32> -> vector<128x128xf32>
    %38 = vector.extract_strided_slice %37 {offsets = [0, 64], sizes = [128, 1], strides = [1, 1]} : vector<128x128xf32> to vector<128x1xf32>
    %39 = vector.extract_strided_slice %37 {offsets = [0, 0], sizes = [128, 64], strides = [1, 1]} : vector<128x128xf32> to vector<128x64xf32>
    %40 = tpu.reciprocal %38 {approx = true} : vector<128x1xf32> -> vector<128x1xf32>
    %41 = vector.broadcast %40 : vector<128x1xf32> to vector<128x64xf32>
    %42 = arith.mulf %39, %41 : vector<128x64xf32>
    %cst_19 = arith.constant 0.000000e+00 : f32
    %43 = vector.broadcast %cst_19 : f32 to vector<128x64xf32>
    %44 = arith.cmpf ogt, %42, %43 : vector<128x64xf32>
    %45 = math.exp %42 : vector<128x64xf32>
    %cst_20 = arith.constant 1.000000e+00 : f32
    %46 = vector.broadcast %cst_20 : f32 to vector<128x64xf32>
    %47 = arith.subf %45, %46 : vector<128x64xf32>
    %48 = arith.select %44, %42, %47 : vector<128x64xi1>, vector<128x64xf32>
    %49 = vector.extract_strided_slice %12 {offsets = [0, 1], sizes = [128, 1], strides = [1, 1]} : vector<128x128xf32> to vector<128x1xf32>
    %50 = vector.extract_strided_slice %6 {offsets = [1, 0], sizes = [1, 128], strides = [1, 1]} : vector<8x128xf32> to vector<1x128xf32>
    %51 = vector.broadcast %49 : vector<128x1xf32> to vector<128x128xf32>
    %52 = vector.broadcast %50 : vector<1x128xf32> to vector<128x128xf32>
    %53 = arith.addf %51, %52 : vector<128x128xf32>
    %cst_21 = arith.constant 2.000000e-01 : f32
    %54 = vector.broadcast %cst_21 : f32 to vector<128x128xf32>
    %55 = arith.mulf %54, %53 : vector<128x128xf32>
    %56 = arith.maximumf %53, %55 : vector<128x128xf32>
    %cst_22 = arith.constant -1.000000e+30 : f32
    %57 = vector.broadcast %cst_22 : f32 to vector<128x128xf32>
    %58 = arith.select %15, %56, %57 : vector<128x128xi1>, vector<128x128xf32>
    %cst_23 = arith.constant dense<0xFF800000> : vector<128xf32>
    %59 = vector.multi_reduction <maximumf>, %58, %cst_23 [1] : vector<128x128xf32> to vector<128xf32>
    %60 = vector.shape_cast %59 : vector<128xf32> to vector<128x1xf32>
    %61 = vector.broadcast %60 : vector<128x1xf32> to vector<128x128xf32>
    %62 = arith.subf %58, %61 : vector<128x128xf32>
    %63 = math.exp %62 : vector<128x128xf32>
    %64 = arith.truncf %63 : vector<128x128xf32> to vector<128x128xbf16>
    %65 = vector.extract_strided_slice %19 {offsets = [0, 128], sizes = [128, 128], strides = [1, 1]} : vector<128x256xbf16> to vector<128x128xbf16>
    %cst_24 = arith.constant dense<0.000000e+00> : vector<128x128xf32>
    %66 = tpu.matmul %64, %65, %cst_24 {dimension_numbers = #tpu.dot_dimension_numbers<[1], [0], [0], [1], [0, 0, 1, 1], [], []>} : vector<128x128xbf16>, vector<128x128xbf16>, vector<128x128xf32> -> vector<128x128xf32>
    %67 = vector.extract_strided_slice %66 {offsets = [0, 64], sizes = [128, 1], strides = [1, 1]} : vector<128x128xf32> to vector<128x1xf32>
    %68 = vector.extract_strided_slice %66 {offsets = [0, 0], sizes = [128, 64], strides = [1, 1]} : vector<128x128xf32> to vector<128x64xf32>
    %69 = tpu.reciprocal %67 {approx = true} : vector<128x1xf32> -> vector<128x1xf32>
    %70 = vector.broadcast %69 : vector<128x1xf32> to vector<128x64xf32>
    %71 = arith.mulf %68, %70 : vector<128x64xf32>
    %cst_25 = arith.constant 0.000000e+00 : f32
    %72 = vector.broadcast %cst_25 : f32 to vector<128x64xf32>
    %73 = arith.cmpf ogt, %71, %72 : vector<128x64xf32>
    %74 = math.exp %71 : vector<128x64xf32>
    %cst_26 = arith.constant 1.000000e+00 : f32
    %75 = vector.broadcast %cst_26 : f32 to vector<128x64xf32>
    %76 = arith.subf %74, %75 : vector<128x64xf32>
    %77 = arith.select %73, %71, %76 : vector<128x64xi1>, vector<128x64xf32>
    %78 = tpu.concatenate %48, %77 in 1 : vector<128x64xf32>, vector<128x64xf32> -> vector<128x128xf32>
    %79 = arith.truncf %78 : vector<128x128xf32> to vector<128x128xbf16>
    %c0_27 = arith.constant 0 : index
    %c0_28 = arith.constant 0 : index
    %80 = vector.load %arg7[%c0_27, %c0_28] : memref<128x128xbf16, #tpu.memory_space<vmem>>, vector<128x128xbf16>
    tpu.vector_store %arg7[%c0_27, %c0_28], %79 {strides = array<i32>} : memref<128x128xbf16, #tpu.memory_space<vmem>>, vector<128x128xbf16>,
    return
  }
  func.func @transform_0(%arg0: i32) -> (i32, i32) {
    %c0_i32 = arith.constant 0 : i32
    %c0_i32_0 = arith.constant 0 : i32
    %c0_i32_1 = arith.constant 0 : i32
    return %c0_i32, %c0_i32_0 : i32, i32
  }
  func.func @transform_1(%arg0: i32) -> (i32, i32) {
    %c0_i32 = arith.constant 0 : i32
    %c0_i32_0 = arith.constant 0 : i32
    %c0_i32_1 = arith.constant 0 : i32
    return %c0_i32, %c0_i32_0 : i32, i32
  }
  func.func @transform_2(%arg0: i32) -> (i32, i32) {
    %c0_i32 = arith.constant 0 : i32
    %c0_i32_0 = arith.constant 0 : i32
    return %arg0, %c0_i32 : i32, i32
  }
  func.func @transform_3(%arg0: i32) -> (i32, i32) {
    %c0_i32 = arith.constant 0 : i32
    %c0_i32_0 = arith.constant 0 : i32
    %c0_i32_1 = arith.constant 0 : i32
    return %c0_i32, %c0_i32_0 : i32, i32
  }
  func.func @transform_4(%arg0: i32) -> (i32, i32) {
    %c0_i32 = arith.constant 0 : i32
    %c0_i32_0 = arith.constant 0 : i32
    %c0_i32_1 = arith.constant 0 : i32
    return %c0_i32, %c0_i32_0 : i32, i32
  }
  func.func @transform_5(%arg0: i32) -> (i32, i32) {
    %c0_i32 = arith.constant 0 : i32
    %c0_i32_0 = arith.constant 0 : i32
    %c0_i32_1 = arith.constant 0 : i32
    return %c0_i32, %c0_i32_0 : i32, i32
  }
  func.func @transform_6(%arg0: i32) -> (i32, i32) {
    %c0_i32 = arith.constant 0 : i32
    %c0_i32_0 = arith.constant 0 : i32
    return %arg0, %c0_i32 : i32, i32
  }
}

</mosaic_0001>

<llo_original>
// kernel: tpu_custom_call.1
$region0: #{tpu_custom_call.1}
  #allocation0 [shape = 'u32[]', space=smem, size = 0x4, offset = 0x4, fixed_abs, tag = 'smem constant byte address 0x4 - core index']
  #allocation1 [shape = 'u32[144,128]{1,0:T(1,128)}', space=vmem, size = 0x12000, scoped, tag = 'internal scratch']
  %s0 = inlined_call_operand.vmem [shape: bf16[128,64], index: 0, kind: input, shape index: {}]
  %s1 = inlined_call_operand.vmem [shape: bf16[64,128], index: 1, kind: input, shape index: {}]
  %s2 = inlined_call_operand.vmem [shape: s8[128,128], index: 2, kind: input, shape index: {}]
  %s3 = inlined_call_operand.vmem [shape: bf16[64,128], index: 3, kind: input, shape index: {}]
  %s4 = inlined_call_operand.hbm [shape: bf16[64,128], index: 4, kind: input, shape index: {}]
  %s5 = inlined_call_operand.vmem [shape: bf16[8,64], index: 5, kind: input, shape index: {}]
  %s6 = inlined_call_operand.hbm [shape: bf16[128,128], index: 6, kind: output, shape index: {}]
  %s7 = sld [smem:[#allocation0]]
  $region38: #{tpu_custom_call.1} parent=0
    _
  %s9 = ssub.s32 1, %s7
  %s10 = scalar_select 0, %s9, %s7
  $region1: #{tpu_custom_call.1} parent=0
    #allocation2 [shape = 'u8[16384]{0}', space=vmem, size = 0x4000, scoped, tag = 'input window, operand 4, single buffered']
    #allocation3 [shape = 's32[1]{0}', space=sflag, size = 0x4, scoped, tag = 'scoped memory for tpu_custom_call.1']
    #allocation4 [shape = 's32[1]{0}', space=sflag, size = 0x4, scoped, tag = 'scoped memory for tpu_custom_call.1']
    #allocation5 [shape = 'u8[32768]{0}', space=vmem, size = 0x8000, scoped, tag = 'output window, operand 0, single buffered']
    %11 = vsyncpa [#allocation3], 0
    %12 = vsyncpa [#allocation4], 0
    // Predicated region
    $region2: #{tpu_custom_call.1} parent=1 // pred_check
      _
    $region3: #{tpu_custom_call.1} parent=1 // pred_check_branch
      %14 = sbr.rel (0) target = $region5
    $region4: #{tpu_custom_call.1} parent=1 // pred_region
      _
    $region5: #{tpu_custom_call.1} parent=1 // pred_fallthru
      _
    // Predicated region
    $region6: #{tpu_custom_call.1} parent=1 // pred_check
      _
    $region7: #{tpu_custom_call.1} parent=1 // pred_check_branch
      %16 = sbr.rel (0) target = $region9
    $region8: #{tpu_custom_call.1} parent=1 // pred_region
      _
    $region9: #{tpu_custom_call.1} parent=1 // pred_fallthru
      _
    // Predicated region
    $region10: #{tpu_custom_call.1} parent=1 // pred_check
      _
    $region11: #{tpu_custom_call.1} parent=1 // pred_check_branch
      %18 = sbr.rel (0) target = $region13
    $region12: #{tpu_custom_call.1} parent=1 // pred_region
      _
    $region13: #{tpu_custom_call.1} parent=1 // pred_fallthru
      _
    // Predicated region
    $region14: #{tpu_custom_call.1} parent=1 // pred_check
      _
    $region15: #{tpu_custom_call.1} parent=1 // pred_check_branch
      %20 = sbr.rel (0) target = $region17
    $region16: #{tpu_custom_call.1} parent=1 // pred_region
      _
    $region17: #{tpu_custom_call.1} parent=1 // pred_fallthru
      _
    // Predicated region
    $region18: #{tpu_custom_call.1} parent=1 // pred_check
      _
    $region19: #{tpu_custom_call.1} parent=1 // pred_check_branch
      %22 = sbr.rel (0) target = $region21
    $region20: #{tpu_custom_call.1} parent=1 // pred_region
      %s24 = ssub.s32 512, 512
      %25 = vsyncadd [#allocation3], %s24
      %s26 = sshll.u32 [#allocation2], 4
      %s27 = int_to_ptr.vmem [resolvable:$true] %s26
      %32 = dma.hbm_to_vmem [thread:$0]  %s4, 512, %s27, [#allocation3], 64, 64, 4
    $region21: #{tpu_custom_call.1} parent=1 // pred_fallthru
      _
    // Predicated region
    $region22: #{tpu_custom_call.1} parent=1 // pred_check
      _
    $region23: #{tpu_custom_call.1} parent=1 // pred_check_branch
      %34 = sbr.rel (0) target = $region25
    $region24: #{tpu_custom_call.1} parent=1 // pred_region
      _
    $region25: #{tpu_custom_call.1} parent=1 // pred_fallthru
      _
    // Predicated region
    $region26: #{tpu_custom_call.1} parent=1 // pred_check
      _
    $region27: #{tpu_custom_call.1} parent=1 // pred_check_branch
      %36 = sbr.rel (0) target = $region29
    $region28: #{tpu_custom_call.1} parent=1 // pred_region
      %37 = dma.done [#allocation3], 512
    $region29: #{tpu_custom_call.1} parent=1 // pred_fallthru
      _
    %v42 = vld [vmem:[%s0] sm:$0xf]
    %v43 = vld [vmem:[%s0 + $0x4] sm:$0xf]
    %v44 = vld [vmem:[%s0 + $0x8] sm:$0xf]
    %v45 = vld [vmem:[%s0 + $0xc] sm:$0xf]
    %v46 = vld [vmem:[%s0 + $0x10] sm:$0xf]
    %v47 = vld [vmem:[%s0 + $0x14] sm:$0xf]
    %v48 = vld [vmem:[%s0 + $0x18] sm:$0xf]
    %v49 = vld [vmem:[%s0 + $0x1c] sm:$0xf]
    %v50 = vld [vmem:[%s0 + $0x20] sm:$0xf]
    %v51 = vld [vmem:[%s0 + $0x24] sm:$0xf]
    %v52 = vld [vmem:[%s0 + $0x28] sm:$0xf]
    %v53 = vld [vmem:[%s0 + $0x2c] sm:$0xf]
    %v54 = vld [vmem:[%s0 + $0x30] sm:$0xf]
    %v55 = vld [vmem:[%s0 + $0x34] sm:$0xf]
    %v56 = vld [vmem:[%s0 + $0x38] sm:$0xf]
    %v57 = vld [vmem:[%s0 + $0x3c] sm:$0xf]
    %v58 = vld [vmem:[%s3] sm:$0xf]
    %v59 = vld [vmem:[%s3 + $0x4] sm:$0xf]
    %v60 = vld [vmem:[%s3 + $0x8] sm:$0xf]
    %v61 = vld [vmem:[%s3 + $0xc] sm:$0xf]
    %v62 = vld [vmem:[%s3 + $0x10] sm:$0xf]
    %v63 = vld [vmem:[%s3 + $0x14] sm:$0xf]
    %v64 = vld [vmem:[%s3 + $0x18] sm:$0xf]
    %v65 = vld [vmem:[%s3 + $0x1c] sm:$0xf]
    %v82 = vunpack.c.l.b16 %v42
    %v83 = vunpack.c.l.b16 %v43
    %v84 = vunpack.c.l.b16 %v44
    %v85 = vunpack.c.l.b16 %v45
    %v86 = vunpack.c.l.b16 %v46
    %v87 = vunpack.c.l.b16 %v47
    %v88 = vunpack.c.l.b16 %v48
    %v89 = vunpack.c.l.b16 %v49
    %v90 = vunpack.c.l.b16 %v50
    %v91 = vunpack.c.l.b16 %v51
    %v92 = vunpack.c.l.b16 %v52
    %v93 = vunpack.c.l.b16 %v53
    %v94 = vunpack.c.l.b16 %v54
    %v95 = vunpack.c.l.b16 %v55
    %v96 = vunpack.c.l.b16 %v56
    %v97 = vunpack.c.l.b16 %v57
    %v98 = vpack.c.b16 %v83, %v82
    %v99 = vpack.c.b16 %v85, %v84
    %v100 = vpack.c.b16 %v87, %v86
    %v101 = vpack.c.b16 %v89, %v88
    %v102 = vpack.c.b16 %v91, %v90
    %v103 = vpack.c.b16 %v93, %v92
    %v104 = vpack.c.b16 %v95, %v94
    %v105 = vpack.c.b16 %v97, %v96
    %v114 = vunpack.c.l.b16 %v58
    %v115 = vunpack.c.l.b16 %v59
    %v116 = vunpack.c.l.b16 %v60
    %v117 = vunpack.c.l.b16 %v61
    %v118 = vunpack.c.l.b16 %v62
    %v119 = vunpack.c.l.b16 %v63
    %v120 = vunpack.c.l.b16 %v64
    %v121 = vunpack.c.l.b16 %v65
    %v122 = vpack.c.b16 %v115, %v114
    %v123 = vpack.c.b16 %v117, %v116
    %v124 = vpack.c.b16 %v119, %v118
    %v125 = vpack.c.b16 %v121, %v120
    %vm130 = vcmask 523264
    %v132 = vsel %vm130, %v98, 0
    %v135 = vsel %vm130, %v99, 0
    %v138 = vsel %vm130, %v100, 0
    %v141 = vsel %vm130, %v101, 0
    %v144 = vsel %vm130, %v102, 0
    %v147 = vsel %vm130, %v103, 0
    %v150 = vsel %vm130, %v104, 0
    %v153 = vsel %vm130, %v105, 0
    %155 = vmatprep.subr.bf16.mxu0 0
    %156 = vmatpush1.bf16.msra.mxu0 %v122
    %157 = vmatprep.subr.bf16.mxu0 0
    %158 = vmatpush1.bf16.msra.mxu0 %v123
    %159 = vmatprep.subr.bf16.mxu0 0
    %160 = vmatpush1.bf16.msra.mxu0 %v124
    %161 = vmatprep.subr.bf16.mxu0 0
    %162 = vmatpush1.bf16.msra.mxu0 %v125
    %163 = vmatprep.subr.bf16.mxu0 0
    %164 = vmatpush1.bf16.msra.mxu0 0
    %165 = vmatprep.subr.bf16.mxu0 0
    %166 = vmatpush1.bf16.msra.mxu0 0
    %167 = vmatprep.subr.bf16.mxu0 0
    %168 = vmatpush1.bf16.msra.mxu0 0
    %169 = vmatprep.subr.bf16.mxu0 0
    %170 = vmatpush1.bf16.msra.mxu0 0
    %171 = vmatprep.subr.bf16.mxu0 0
    %172 = vmatpush1.bf16.msra.mxu0 0
    %173 = vmatprep.subr.bf16.mxu0 0
    %174 = vmatpush1.bf16.msra.mxu0 0
    %175 = vmatprep.subr.bf16.mxu0 0
    %176 = vmatpush1.bf16.msra.mxu0 0
    %177 = vmatprep.subr.bf16.mxu0 0
    %178 = vmatpush1.bf16.msra.mxu0 0
    %179 = vmatprep.subr.bf16.mxu0 0
    %180 = vmatpush1.bf16.msra.mxu0 0
    %181 = vmatprep.subr.bf16.mxu0 0
    %182 = vmatpush1.bf16.msra.mxu0 0
    %183 = vmatprep.subr.bf16.mxu0 0
    %184 = vmatpush1.bf16.msra.mxu0 0
    %185 = vmatprep.subr.bf16.mxu0 0
    %186 = vmatpush1.bf16.msra.mxu0 0
    %187 = vmatprep.mubr.bf16.mxu0 0
    %188 = vmatmul.mubr.bf16.gmra.mrb[0].mxu0 %v132
    %v189 = vpop.f32.mrb[0].mxu0
    %v190 = vadd.f32 0.0, %v189
    %v191 = vpop.f32.mrb[0].mxu0
    %v192 = vpop.f32.mrb[0].mxu0
    %v193 = vadd.f32 0.0, %v192
    %v194 = vpop.f32.mrb[0].mxu0
    %195 = vmatprep.mubr.bf16.mxu0 0
    %196 = vmatmul.mubr.bf16.gmra.mrb[0].mxu0 %v135
    %v197 = vpop.f32.mrb[0].mxu0
    %v198 = vadd.f32 0.0, %v197
    %v199 = vpop.f32.mrb[0].mxu0
    %v200 = vpop.f32.mrb[0].mxu0
    %v201 = vadd.f32 0.0, %v200
    %v202 = vpop.f32.mrb[0].mxu0
    %203 = vmatprep.mubr.bf16.mxu0 0
    %204 = vmatmul.mubr.bf16.gmra.mrb[0].mxu0 %v138
    %v205 = vpop.f32.mrb[0].mxu0
    %v206 = vadd.f32 0.0, %v205
    %v207 = vpop.f32.mrb[0].mxu0
    %v208 = vpop.f32.mrb[0].mxu0
    %v209 = vadd.f32 0.0, %v208
    %v210 = vpop.f32.mrb[0].mxu0
    %211 = vmatprep.mubr.bf16.mxu0 0
    %212 = vmatmul.mubr.bf16.gmra.mrb[0].mxu0 %v141
    %v213 = vpop.f32.mrb[0].mxu0
    %v214 = vadd.f32 0.0, %v213
    %v215 = vpop.f32.mrb[0].mxu0
    %v216 = vpop.f32.mrb[0].mxu0
    %v217 = vadd.f32 0.0, %v216
    %v218 = vpop.f32.mrb[0].mxu0
    %219 = vmatprep.mubr.bf16.mxu0 0
    %220 = vmatmul.mubr.bf16.gmra.mrb[0].mxu0 %v144
    %v221 = vpop.f32.mrb[0].mxu0
    %v222 = vadd.f32 0.0, %v221
    %v223 = vpop.f32.mrb[0].mxu0
    %v224 = vpop.f32.mrb[0].mxu0
    %v225 = vadd.f32 0.0, %v224
    %v226 = vpop.f32.mrb[0].mxu0
    %227 = vmatprep.mubr.bf16.mxu0 0
    %228 = vmatmul.mubr.bf16.gmra.mrb[0].mxu0 %v147
    %v229 = vpop.f32.mrb[0].mxu0
    %v230 = vadd.f32 0.0, %v229
    %v231 = vpop.f32.mrb[0].mxu0
    %v232 = vpop.f32.mrb[0].mxu0
    %v233 = vadd.f32 0.0, %v232
    %v234 = vpop.f32.mrb[0].mxu0
    %235 = vmatprep.mubr.bf16.mxu0 0
    %236 = vmatmul.mubr.bf16.gmra.mrb[0].mxu0 %v150
    %v237 = vpop.f32.mrb[0].mxu0
    %v238 = vadd.f32 0.0, %v237
    %v239 = vpop.f32.mrb[0].mxu0
    %v240 = vpop.f32.mrb[0].mxu0
    %v241 = vadd.f32 0.0, %v240
    %v242 = vpop.f32.mrb[0].mxu0
    %243 = vmatprep.mubr.bf16.mxu0 0
    %244 = vmatmul.mubr.bf16.gmra.mrb[0].mxu0 %v153
    %v245 = vpop.f32.mrb[0].mxu0
    %v246 = vadd.f32 0.0, %v245
    %v247 = vpop.f32.mrb[0].mxu0
    %v248 = vpop.f32.mrb[0].mxu0
    %v249 = vadd.f32 0.0, %v248
    %v250 = vpop.f32.mrb[0].mxu0
    %251 = vdwg.mxu0
    %v252 = vpack.c.bf16 %v193, %v190
    %v253 = vpack.c.bf16 %v201, %v198
    %v254 = vpack.c.bf16 %v209, %v206
    %v255 = vpack.c.bf16 %v217, %v214
    %v256 = vpack.c.bf16 %v225, %v222
    %v257 = vpack.c.bf16 %v233, %v230
    %v258 = vpack.c.bf16 %v241, %v238
    %v259 = vpack.c.bf16 %v249, %v246
    %v260 = vld [vmem:[%s5] sm:$0xf]
    %v261 = vld [vmem:[%s1] sm:$0xf]
    %v262 = vld [vmem:[%s1 + $0x4] sm:$0xf]
    %v263 = vld [vmem:[%s1 + $0x8] sm:$0xf]
    %v264 = vld [vmem:[%s1 + $0xc] sm:$0xf]
    %v265 = vld [vmem:[%s1 + $0x10] sm:$0xf]
    %v266 = vld [vmem:[%s1 + $0x14] sm:$0xf]
    %v267 = vld [vmem:[%s1 + $0x18] sm:$0xf]
    %v268 = vld [vmem:[%s1 + $0x1c] sm:$0xf]
    %v277 = vunpack.c.l.b16 %v261
    %v278 = vunpack.c.l.b16 %v262
    %v279 = vunpack.c.l.b16 %v263
    %v280 = vunpack.c.l.b16 %v264
    %v281 = vunpack.c.l.b16 %v265
    %v282 = vunpack.c.l.b16 %v266
    %v283 = vunpack.c.l.b16 %v267
    %v284 = vunpack.c.l.b16 %v268
    %v285 = vpack.c.b16 %v278, %v277
    %v286 = vpack.c.b16 %v280, %v279
    %v287 = vpack.c.b16 %v282, %v281
    %v288 = vpack.c.b16 %v284, %v283
    %v294 = vsel %vm130, %v260, 0
    %296 = vmatprep.subr.bf16.mxu0 0
    %297 = vmatpush1.bf16.msra.mxu0 %v285
    %298 = vmatprep.subr.bf16.mxu0 0
    %299 = vmatpush1.bf16.msra.mxu0 %v286
    %300 = vmatprep.subr.bf16.mxu0 0
    %301 = vmatpush1.bf16.msra.mxu0 %v287
    %302 = vmatprep.subr.bf16.mxu0 0
    %303 = vmatpush1.bf16.msra.mxu0 %v288
    %304 = vmatprep.subr.bf16.mxu0 0
    %305 = vmatpush1.bf16.msra.mxu0 0
    %306 = vmatprep.subr.bf16.mxu0 0
    %307 = vmatpush1.bf16.msra.mxu0 0
    %308 = vmatprep.subr.bf16.mxu0 0
    %309 = vmatpush1.bf16.msra.mxu0 0
    %310 = vmatprep.subr.bf16.mxu0 0
    %311 = vmatpush1.bf16.msra.mxu0 0
    %312 = vmatprep.subr.bf16.mxu0 0
    %313 = vmatpush1.bf16.msra.mxu0 0
    %314 = vmatprep.subr.bf16.mxu0 0
    %315 = vmatpush1.bf16.msra.mxu0 0
    %316 = vmatprep.subr.bf16.mxu0 0
    %317 = vmatpush1.bf16.msra.mxu0 0
    %318 = vmatprep.subr.bf16.mxu0 0
    %319 = vmatpush1.bf16.msra.mxu0 0
    %320 = vmatprep.subr.bf16.mxu0 0
    %321 = vmatpush1.bf16.msra.mxu0 0
    %322 = vmatprep.subr.bf16.mxu0 0
    %323 = vmatpush1.bf16.msra.mxu0 0
    %324 = vmatprep.subr.bf16.mxu0 0
    %325 = vmatpush1.bf16.msra.mxu0 0
    %326 = vmatprep.subr.bf16.mxu0 0
    %327 = vmatpush1.bf16.msra.mxu0 0
    %328 = vmatprep.mubr.bf16.mxu0 0
    %329 = vmatmul.mubr.bf16.gmra.mrb[0].mxu0 %v294
    %v330 = vpop.f32.mrb[0].mxu0
    %v331 = vadd.f32 0.0, %v330
    %v332 = vpop.f32.mrb[0].mxu0
    %v333 = vpop.f32.mrb[0].mxu0
    %v334 = vpop.f32.mrb[0].mxu0
    %335 = vdwg.mxu0
    %s336 = smul.u32 0, 128
    %s337 = sshra.s32 %s336, 3
    %s338 = sand.u32 %s336, 7
    %s339 = smul.addr %s337, 4
    %s340 = scalar_lea.vmem %s0, %s339
    %v341 = vld [vmem:[%s340] sm:$0xf]
    %v342 = vld [vmem:[%s340 + $0x4] sm:$0xf]
    %v343 = vld [vmem:[%s340 + $0x8] sm:$0xf]
    %v344 = vld [vmem:[%s340 + $0xc] sm:$0xf]
    %v345 = vld [vmem:[%s340 + $0x10] sm:$0xf]
    %v346 = vld [vmem:[%s340 + $0x14] sm:$0xf]
    %v347 = vld [vmem:[%s340 + $0x18] sm:$0xf]
    %v348 = vld [vmem:[%s340 + $0x1c] sm:$0xf]
    %v349 = vld [vmem:[%s340 + $0x20] sm:$0xf]
    %v350 = vld [vmem:[%s340 + $0x24] sm:$0xf]
    %v351 = vld [vmem:[%s340 + $0x28] sm:$0xf]
    %v352 = vld [vmem:[%s340 + $0x2c] sm:$0xf]
    %v353 = vld [vmem:[%s340 + $0x30] sm:$0xf]
    %v354 = vld [vmem:[%s340 + $0x34] sm:$0xf]
    %v355 = vld [vmem:[%s340 + $0x38] sm:$0xf]
    %v356 = vld [vmem:[%s340 + $0x3c] sm:$0xf]
    %v357 = vld [vmem:[#allocation2] sm:$0xf]
    %v358 = vld [vmem:[#allocation2 + $0x4] sm:$0xf]
    %v359 = vld [vmem:[#allocation2 + $0x8] sm:$0xf]
    %v360 = vld [vmem:[#allocation2 + $0xc] sm:$0xf]
    %v361 = vld [vmem:[#allocation2 + $0x10] sm:$0xf]
    %v362 = vld [vmem:[#allocation2 + $0x14] sm:$0xf]
    %v363 = vld [vmem:[#allocation2 + $0x18] sm:$0xf]
    %v364 = vld [vmem:[#allocation2 + $0x1c] sm:$0xf]
    %v381 = vunpack.c.l.b16 %v341
    %v382 = vunpack.c.l.b16 %v342
    %v383 = vunpack.c.l.b16 %v343
    %v384 = vunpack.c.l.b16 %v344
    %v385 = vunpack.c.l.b16 %v345
    %v386 = vunpack.c.l.b16 %v346
    %v387 = vunpack.c.l.b16 %v347
    %v388 = vunpack.c.l.b16 %v348
    %v389 = vunpack.c.l.b16 %v349
    %v390 = vunpack.c.l.b16 %v350
    %v391 = vunpack.c.l.b16 %v351
    %v392 = vunpack.c.l.b16 %v352
    %v393 = vunpack.c.l.b16 %v353
    %v394 = vunpack.c.l.b16 %v354
    %v395 = vunpack.c.l.b16 %v355
    %v396 = vunpack.c.l.b16 %v356
    %v397 = vpack.c.b16 %v382, %v381
    %v398 = vpack.c.b16 %v384, %v383
    %v399 = vpack.c.b16 %v386, %v385
    %v400 = vpack.c.b16 %v388, %v387
    %v401 = vpack.c.b16 %v390, %v389
    %v402 = vpack.c.b16 %v392, %v391
    %v403 = vpack.c.b16 %v394, %v393
    %v404 = vpack.c.b16 %v396, %v395
    %v413 = vunpack.c.l.b16 %v357
    %v414 = vunpack.c.l.b16 %v358
    %v415 = vunpack.c.l.b16 %v359
    %v416 = vunpack.c.l.b16 %v360
    %v417 = vunpack.c.l.b16 %v361
    %v418 = vunpack.c.l.b16 %v362
    %v419 = vunpack.c.l.b16 %v363
    %v420 = vunpack.c.l.b16 %v364
    %v421 = vpack.c.b16 %v414, %v413
    %v422 = vpack.c.b16 %v416, %v415
    %v423 = vpack.c.b16 %v418, %v417
    %v424 = vpack.c.b16 %v420, %v419
    %v430 = vsel %vm130, %v397, 0
    %v433 = vsel %vm130, %v398, 0
    %v436 = vsel %vm130, %v399, 0
    %v439 = vsel %vm130, %v400, 0
    %v442 = vsel %vm130, %v401, 0
    %v445 = vsel %vm130, %v402, 0
    %v448 = vsel %vm130, %v403, 0
    %v451 = vsel %vm130, %v404, 0
    %453 = vmatprep.subr.bf16.mxu0 0
    %454 = vmatpush1.bf16.msra.mxu0 %v421
    %455 = vmatprep.subr.bf16.mxu0 0
    %456 = vmatpush1.bf16.msra.mxu0 %v422
    %457 = vmatprep.subr.bf16.mxu0 0
    %458 = vmatpush1.bf16.msra.mxu0 %v423
    %459 = vmatprep.subr.bf16.mxu0 0
    %460 = vmatpush1.bf16.msra.mxu0 %v424
    %461 = vmatprep.subr.bf16.mxu0 0
    %462 = vmatpush1.bf16.msra.mxu0 0
    %463 = vmatprep.subr.bf16.mxu0 0
    %464 = vmatpush1.bf16.msra.mxu0 0
    %465 = vmatprep.subr.bf16.mxu0 0
    %466 = vmatpush1.bf16.msra.mxu0 0
    %467 = vmatprep.subr.bf16.mxu0 0
    %468 = vmatpush1.bf16.msra.mxu0 0
    %469 = vmatprep.subr.bf16.mxu0 0
    %470 = vmatpush1.bf16.msra.mxu0 0
    %471 = vmatprep.subr.bf16.mxu0 0
    %472 = vmatpush1.bf16.msra.mxu0 0
    %473 = vmatprep.subr.bf16.mxu0 0
    %474 = vmatpush1.bf16.msra.mxu0 0
    %475 = vmatprep.subr.bf16.mxu0 0
    %476 = vmatpush1.bf16.msra.mxu0 0
    %477 = vmatprep.subr.bf16.mxu0 0
    %478 = vmatpush1.bf16.msra.mxu0 0
    %479 = vmatprep.subr.bf16.mxu0 0
    %480 = vmatpush1.bf16.msra.mxu0 0
    %481 = vmatprep.subr.bf16.mxu0 0
    %482 = vmatpush1.bf16.msra.mxu0 0
    %483 = vmatprep.subr.bf16.mxu0 0
    %484 = vmatpush1.bf16.msra.mxu0 0
    %485 = vmatprep.mubr.bf16.mxu0 0
    %486 = vmatmul.mubr.bf16.gmra.mrb[0].mxu0 %v430
    %v487 = vpop.f32.mrb[0].mxu0
    %v488 = vadd.f32 0.0, %v487
    %v489 = vpop.f32.mrb[0].mxu0
    %v490 = vpop.f32.mrb[0].mxu0
    %v491 = vadd.f32 0.0, %v490
    %v492 = vpop.f32.mrb[0].mxu0
    %493 = vmatprep.mubr.bf16.mxu0 0
    %494 = vmatmul.mubr.bf16.gmra.mrb[0].mxu0 %v433
    %v495 = vpop.f32.mrb[0].mxu0
    %v496 = vadd.f32 0.0, %v495
    %v497 = vpop.f32.mrb[0].mxu0
    %v498 = vpop.f32.mrb[0].mxu0
    %v499 = vadd.f32 0.0, %v498
    %v500 = vpop.f32.mrb[0].mxu0
    %501 = vmatprep.mubr.bf16.mxu0 0
    %502 = vmatmul.mubr.bf16.gmra.mrb[0].mxu0 %v436
    %v503 = vpop.f32.mrb[0].mxu0
    %v504 = vadd.f32 0.0, %v503
    %v505 = vpop.f32.mrb[0].mxu0
    %v506 = vpop.f32.mrb[0].mxu0
    %v507 = vadd.f32 0.0, %v506
    %v508 = vpop.f32.mrb[0].mxu0
    %509 = vmatprep.mubr.bf16.mxu0 0
    %510 = vmatmul.mubr.bf16.gmra.mrb[0].mxu0 %v439
    %v511 = vpop.f32.mrb[0].mxu0
    %v512 = vadd.f32 0.0, %v511
    %v513 = vpop.f32.mrb[0].mxu0
    %v514 = vpop.f32.mrb[0].mxu0
    %v515 = vadd.f32 0.0, %v514
    %v516 = vpop.f32.mrb[0].mxu0
    %517 = vmatprep.mubr.bf16.mxu0 0
    %518 = vmatmul.mubr.bf16.gmra.mrb[0].mxu0 %v442
    %v519 = vpop.f32.mrb[0].mxu0
    %v520 = vadd.f32 0.0, %v519
    %v521 = vpop.f32.mrb[0].mxu0
    %v522 = vpop.f32.mrb[0].mxu0
    %v523 = vadd.f32 0.0, %v522
    %v524 = vpop.f32.mrb[0].mxu0
    %525 = vmatprep.mubr.bf16.mxu0 0
    %526 = vmatmul.mubr.bf16.gmra.mrb[0].mxu0 %v445
    %v527 = vpop.f32.mrb[0].mxu0
    %v528 = vadd.f32 0.0, %v527
    %v529 = vpop.f32.mrb[0].mxu0
    %v530 = vpop.f32.mrb[0].mxu0
    %v531 = vadd.f32 0.0, %v530
    %v532 = vpop.f32.mrb[0].mxu0
    %533 = vmatprep.mubr.bf16.mxu0 0
    %534 = vmatmul.mubr.bf16.gmra.mrb[0].mxu0 %v448
    %v535 = vpop.f32.mrb[0].mxu0
    %v536 = vadd.f32 0.0, %v535
    %v537 = vpop.f32.mrb[0].mxu0
    %v538 = vpop.f32.mrb[0].mxu0
    %v539 = vadd.f32 0.0, %v538
    %v540 = vpop.f32.mrb[0].mxu0
    %541 = vmatprep.mubr.bf16.mxu0 0
    %542 = vmatmul.mubr.bf16.gmra.mrb[0].mxu0 %v451
    %v543 = vpop.f32.mrb[0].mxu0
    %v544 = vadd.f32 0.0, %v543
    %v545 = vpop.f32.mrb[0].mxu0
    %v546 = vpop.f32.mrb[0].mxu0
    %v547 = vadd.f32 0.0, %v546
    %v548 = vpop.f32.mrb[0].mxu0
    %549 = vdwg.mxu0
    %v550 = vld [vmem:[%s2] sm:$0xff]
    %v551 = vld [vmem:[%s2 + $0x8] sm:$0xff]
    %v552 = vld [vmem:[%s2 + $0x10] sm:$0xff]
    %v553 = vld [vmem:[%s2 + $0x18] sm:$0xff]
    %vm554 = vnez %v550
    %vm555 = vnez %v551
    %vm556 = vnez %v552
    %vm557 = vnez %v553
    %566 = vrot.lane.b32.xlu0 %v252, 64
    %v567 = vpop.permute.xlu0 %566
    %568 = vrot.lane.b32.xlu0 %v253, 64
    %v569 = vpop.permute.xlu0 %568
    %570 = vrot.lane.b32.xlu0 %v254, 64
    %v571 = vpop.permute.xlu0 %570
    %572 = vrot.lane.b32.xlu0 %v255, 64
    %v573 = vpop.permute.xlu0 %572
    %574 = vrot.lane.b32.xlu0 %v256, 64
    %v575 = vpop.permute.xlu0 %574
    %576 = vrot.lane.b32.xlu0 %v257, 64
    %v577 = vpop.permute.xlu0 %576
    %578 = vrot.lane.b32.xlu0 %v258, 64
    %v579 = vpop.permute.xlu0 %578
    %580 = vrot.lane.b32.xlu0 %v259, 64
    %v581 = vpop.permute.xlu0 %580
    %v584 = vsel %vm130, %v252, 1065369472
    %v587 = vsel %vm130, %v253, 1065369472
    %v590 = vsel %vm130, %v254, 1065369472
    %v593 = vsel %vm130, %v255, 1065369472
    %v596 = vsel %vm130, %v256, 1065369472
    %v599 = vsel %vm130, %v257, 1065369472
    %v602 = vsel %vm130, %v258, 1065369472
    %v605 = vsel %vm130, %v259, 1065369472
    %v608 = vsel %vm130, %v567, 1065369472
    %v611 = vsel %vm130, %v569, 1065369472
    %v614 = vsel %vm130, %v571, 1065369472
    %v617 = vsel %vm130, %v573, 1065369472
    %v620 = vsel %vm130, %v575, 1065369472
    %v623 = vsel %vm130, %v577, 1065369472
    %v626 = vsel %vm130, %v579, 1065369472
    %v629 = vsel %vm130, %v581, 1065369472
    %632 = vset.pattern.permute.xlu0 0
    %633 = vperm.xlu0 %632, %v488
    %v634 = vpop.permute.xlu0 %633
    %637 = vset.pattern.permute.xlu0 0
    %638 = vperm.xlu0 %637, %v491
    %v639 = vpop.permute.xlu0 %638
    %642 = vset.pattern.permute.xlu0 0
    %643 = vperm.xlu0 %642, %v496
    %v644 = vpop.permute.xlu0 %643
    %647 = vset.pattern.permute.xlu0 0
    %648 = vperm.xlu0 %647, %v499
    %v649 = vpop.permute.xlu0 %648
    %652 = vset.pattern.permute.xlu0 0
    %653 = vperm.xlu0 %652, %v504
    %v654 = vpop.permute.xlu0 %653
    %657 = vset.pattern.permute.xlu0 0
    %658 = vperm.xlu0 %657, %v507
    %v659 = vpop.permute.xlu0 %658
    %662 = vset.pattern.permute.xlu0 0
    %663 = vperm.xlu0 %662, %v512
    %v664 = vpop.permute.xlu0 %663
    %667 = vset.pattern.permute.xlu0 0
    %668 = vperm.xlu0 %667, %v515
    %v669 = vpop.permute.xlu0 %668
    %672 = vset.pattern.permute.xlu0 0
    %673 = vperm.xlu0 %672, %v520
    %v674 = vpop.permute.xlu0 %673
    %677 = vset.pattern.permute.xlu0 0
    %678 = vperm.xlu0 %677, %v523
    %v679 = vpop.permute.xlu0 %678
    %682 = vset.pattern.permute.xlu0 0
    %683 = vperm.xlu0 %682, %v528
    %v684 = vpop.permute.xlu0 %683
    %687 = vset.pattern.permute.xlu0 0
    %688 = vperm.xlu0 %687, %v531
    %v689 = vpop.permute.xlu0 %688
    %692 = vset.pattern.permute.xlu0 0
    %693 = vperm.xlu0 %692, %v536
    %v694 = vpop.permute.xlu0 %693
    %697 = vset.pattern.permute.xlu0 0
    %698 = vperm.xlu0 %697, %v539
    %v699 = vpop.permute.xlu0 %698
    %702 = vset.pattern.permute.xlu0 0
    %703 = vperm.xlu0 %702, %v544
    %v704 = vpop.permute.xlu0 %703
    %707 = vset.pattern.permute.xlu0 0
    %708 = vperm.xlu0 %707, %v547
    %v709 = vpop.permute.xlu0 %708
    %v711 = vlaneseq
    %v712 = vshrl.u32 %v711, 7
    %v713 = vsub.s32 0, %v712
    %v714 = vrot.slane %v331, %v713
    %v715 = vadd.f32 %v634, %v714
    %v716 = vadd.f32 %v639, %v714
    %v717 = vadd.f32 %v644, %v714
    %v718 = vadd.f32 %v649, %v714
    %v719 = vadd.f32 %v654, %v714
    %v720 = vadd.f32 %v659, %v714
    %v721 = vadd.f32 %v664, %v714
    %v722 = vadd.f32 %v669, %v714
    %v723 = vadd.f32 %v674, %v714
    %v724 = vadd.f32 %v679, %v714
    %v725 = vadd.f32 %v684, %v714
    %v726 = vadd.f32 %v689, %v714
    %v727 = vadd.f32 %v694, %v714
    %v728 = vadd.f32 %v699, %v714
    %v729 = vadd.f32 %v704, %v714
    %v730 = vadd.f32 %v709, %v714
    %v731 = vmul.f32 %v715, 0.2
    %v732 = vmul.f32 %v716, 0.2
    %v733 = vmul.f32 %v717, 0.2
    %v734 = vmul.f32 %v718, 0.2
    %v735 = vmul.f32 %v719, 0.2
    %v736 = vmul.f32 %v720, 0.2
    %v737 = vmul.f32 %v721, 0.2
    %v738 = vmul.f32 %v722, 0.2
    %v739 = vmul.f32 %v723, 0.2
    %v740 = vmul.f32 %v724, 0.2
    %v741 = vmul.f32 %v725, 0.2
    %v742 = vmul.f32 %v726, 0.2
    %v743 = vmul.f32 %v727, 0.2
    %v744 = vmul.f32 %v728, 0.2
    %v745 = vmul.f32 %v729, 0.2
    %v746 = vmul.f32 %v730, 0.2
    %v747 = vmax.f32 %v715, %v731
    %v748 = vmax.f32 %v716, %v732
    %v749 = vmax.f32 %v717, %v733
    %v750 = vmax.f32 %v718, %v734
    %v751 = vmax.f32 %v719, %v735
    %v752 = vmax.f32 %v720, %v736
    %v753 = vmax.f32 %v721, %v737
    %v754 = vmax.f32 %v722, %v738
    %v755 = vmax.f32 %v723, %v739
    %v756 = vmax.f32 %v724, %v740
    %v757 = vmax.f32 %v725, %v741
    %v758 = vmax.f32 %v726, %v742
    %v759 = vmax.f32 %v727, %v743
    %v760 = vmax.f32 %v728, %v744
    %v761 = vmax.f32 %v729, %v745
    %v762 = vmax.f32 %v730, %v746
    %v763 = vsel %vm554, 16843009, 0
    %v764 = vsel %vm555, 16843009, 0
    %v765 = vsel %vm556, 16843009, 0
    %v766 = vsel %vm557, 16843009, 0
    %v767 = vunpack.c.0.s8 %v763
    %v768 = vunpack.c.1.s8 %v763
    %v769 = vunpack.c.2.s8 %v763
    %v770 = vunpack.c.3.s8 %v763
    %v771 = vunpack.c.0.s8 %v764
    %v772 = vunpack.c.1.s8 %v764
    %v773 = vunpack.c.2.s8 %v764
    %v774 = vunpack.c.3.s8 %v764
    %v775 = vunpack.c.0.s8 %v765
    %v776 = vunpack.c.1.s8 %v765
    %v777 = vunpack.c.2.s8 %v765
    %v778 = vunpack.c.3.s8 %v765
    %v779 = vunpack.c.0.s8 %v766
    %v780 = vunpack.c.1.s8 %v766
    %v781 = vunpack.c.2.s8 %v766
    %v782 = vunpack.c.3.s8 %v766
    %v783 = vpack.c.b16 %v767, %v767
    %v784 = vpack.c.b8 %v783, %v783
    %v785 = vpack.c.b16 %v768, %v768
    %v786 = vpack.c.b8 %v785, %v785
    %v787 = vpack.c.b16 %v769, %v769
    %v788 = vpack.c.b8 %v787, %v787
    %v789 = vpack.c.b16 %v770, %v770
    %v790 = vpack.c.b8 %v789, %v789
    %v791 = vpack.c.b16 %v771, %v771
    %v792 = vpack.c.b8 %v791, %v791
    %v793 = vpack.c.b16 %v772, %v772
    %v794 = vpack.c.b8 %v793, %v793
    %v795 = vpack.c.b16 %v773, %v773
    %v796 = vpack.c.b8 %v795, %v795
    %v797 = vpack.c.b16 %v774, %v774
    %v798 = vpack.c.b8 %v797, %v797
    %v799 = vpack.c.b16 %v775, %v775
    %v800 = vpack.c.b8 %v799, %v799
    %v801 = vpack.c.b16 %v776, %v776
    %v802 = vpack.c.b8 %v801, %v801
    %v803 = vpack.c.b16 %v777, %v777
    %v804 = vpack.c.b8 %v803, %v803
    %v805 = vpack.c.b16 %v778, %v778
    %v806 = vpack.c.b8 %v805, %v805
    %v807 = vpack.c.b16 %v779, %v779
    %v808 = vpack.c.b8 %v807, %v807
    %v809 = vpack.c.b16 %v780, %v780
    %v810 = vpack.c.b8 %v809, %v809
    %v811 = vpack.c.b16 %v781, %v781
    %v812 = vpack.c.b8 %v811, %v811
    %v813 = vpack.c.b16 %v782, %v782
    %v814 = vpack.c.b8 %v813, %v813
    %vm815 = vnez %v784
    %vm816 = vnez %v786
    %vm817 = vnez %v788
    %vm818 = vnez %v790
    %vm819 = vnez %v792
    %vm820 = vnez %v794
    %vm821 = vnez %v796
    %vm822 = vnez %v798
    %vm823 = vnez %v800
    %vm824 = vnez %v802
    %vm825 = vnez %v804
    %vm826 = vnez %v806
    %vm827 = vnez %v808
    %vm828 = vnez %v810
    %vm829 = vnez %v812
    %vm830 = vnez %v814
    %v831 = vsel %vm815, 16843009, 0
    %v832 = vsel %vm816, 16843009, 0
    %v833 = vsel %vm817, 16843009, 0
    %v834 = vsel %vm818, 16843009, 0
    %v835 = vsel %vm819, 16843009, 0
    %v836 = vsel %vm820, 16843009, 0
    %v837 = vsel %vm821, 16843009, 0
    %v838 = vsel %vm822, 16843009, 0
    %v839 = vsel %vm823, 16843009, 0
    %v840 = vsel %vm824, 16843009, 0
    %v841 = vsel %vm825, 16843009, 0
    %v842 = vsel %vm826, 16843009, 0
    %v843 = vsel %vm827, 16843009, 0
    %v844 = vsel %vm828, 16843009, 0
    %v845 = vsel %vm829, 16843009, 0
    %v846 = vsel %vm830, 16843009, 0
    %v847 = vunpack.c.0.s8 %v831
    %v848 = vunpack.c.0.s8 %v832
    %v849 = vunpack.c.0.s8 %v833
    %v850 = vunpack.c.0.s8 %v834
    %v851 = vunpack.c.0.s8 %v835
    %v852 = vunpack.c.0.s8 %v836
    %v853 = vunpack.c.0.s8 %v837
    %v854 = vunpack.c.0.s8 %v838
    %v855 = vunpack.c.0.s8 %v839
    %v856 = vunpack.c.0.s8 %v840
    %v857 = vunpack.c.0.s8 %v841
    %v858 = vunpack.c.0.s8 %v842
    %v859 = vunpack.c.0.s8 %v843
    %v860 = vunpack.c.0.s8 %v844
    %v861 = vunpack.c.0.s8 %v845
    %v862 = vunpack.c.0.s8 %v846
    %vm863 = vcmp.ne.s32.totalorder %v847, 0
    %vm864 = vcmp.ne.s32.totalorder %v848, 0
    %vm865 = vcmp.ne.s32.totalorder %v849, 0
    %vm866 = vcmp.ne.s32.totalorder %v850, 0
    %vm867 = vcmp.ne.s32.totalorder %v851, 0
    %vm868 = vcmp.ne.s32.totalorder %v852, 0
    %vm869 = vcmp.ne.s32.totalorder %v853, 0
    %vm870 = vcmp.ne.s32.totalorder %v854, 0
    %vm871 = vcmp.ne.s32.totalorder %v855, 0
    %vm872 = vcmp.ne.s32.totalorder %v856, 0
    %vm873 = vcmp.ne.s32.totalorder %v857, 0
    %vm874 = vcmp.ne.s32.totalorder %v858, 0
    %vm875 = vcmp.ne.s32.totalorder %v859, 0
    %vm876 = vcmp.ne.s32.totalorder %v860, 0
    %vm877 = vcmp.ne.s32.totalorder %v861, 0
    %vm878 = vcmp.ne.s32.totalorder %v862, 0
    %v879 = vsel %vm863, %v747, -1e+30
    %v880 = vsel %vm864, %v748, -1e+30
    %v881 = vsel %vm865, %v749, -1e+30
    %v882 = vsel %vm866, %v750, -1e+30
    %v883 = vsel %vm867, %v751, -1e+30
    %v884 = vsel %vm868, %v752, -1e+30
    %v885 = vsel %vm869, %v753, -1e+30
    %v886 = vsel %vm870, %v754, -1e+30
    %v887 = vsel %vm871, %v755, -1e+30
    %v888 = vsel %vm872, %v756, -1e+30
    %v889 = vsel %vm873, %v757, -1e+30
    %v890 = vsel %vm874, %v758, -1e+30
    %v891 = vsel %vm875, %v759, -1e+30
    %v892 = vsel %vm876, %v760, -1e+30
    %v893 = vsel %vm877, %v761, -1e+30
    %v894 = vsel %vm878, %v762, -1e+30
    %895 = vmax.xlane.f32.xlu0 %v879
    %v896 = vpop.xlane.xlu0 %895
    %897 = vmax.xlane.f32.xlu0 %v880
    %v898 = vpop.xlane.xlu0 %897
    %899 = vmax.xlane.f32.xlu0 %v881
    %v900 = vpop.xlane.xlu0 %899
    %901 = vmax.xlane.f32.xlu0 %v882
    %v902 = vpop.xlane.xlu0 %901
    %903 = vmax.xlane.f32.xlu0 %v883
    %v904 = vpop.xlane.xlu0 %903
    %905 = vmax.xlane.f32.xlu0 %v884
    %v906 = vpop.xlane.xlu0 %905
    %907 = vmax.xlane.f32.xlu0 %v885
    %v908 = vpop.xlane.xlu0 %907
    %909 = vmax.xlane.f32.xlu0 %v886
    %v910 = vpop.xlane.xlu0 %909
    %911 = vmax.xlane.f32.xlu0 %v887
    %v912 = vpop.xlane.xlu0 %911
    %913 = vmax.xlane.f32.xlu0 %v888
    %v914 = vpop.xlane.xlu0 %913
    %915 = vmax.xlane.f32.xlu0 %v889
    %v916 = vpop.xlane.xlu0 %915
    %917 = vmax.xlane.f32.xlu0 %v890
    %v918 = vpop.xlane.xlu0 %917
    %919 = vmax.xlane.f32.xlu0 %v891
    %v920 = vpop.xlane.xlu0 %919
    %921 = vmax.xlane.f32.xlu0 %v892
    %v922 = vpop.xlane.xlu0 %921
    %923 = vmax.xlane.f32.xlu0 %v893
    %v924 = vpop.xlane.xlu0 %923
    %925 = vmax.xlane.f32.xlu0 %v894
    %v926 = vpop.xlane.xlu0 %925
    %v927 = vsub.f32 %v879, %v896
    %v928 = vsub.f32 %v880, %v898
    %v929 = vsub.f32 %v881, %v900
    %v930 = vsub.f32 %v882, %v902
    %v931 = vsub.f32 %v883, %v904
    %v932 = vsub.f32 %v884, %v906
    %v933 = vsub.f32 %v885, %v908
    %v934 = vsub.f32 %v886, %v910
    %v935 = vsub.f32 %v887, %v912
    %v936 = vsub.f32 %v888, %v914
    %v937 = vsub.f32 %v889, %v916
    %v938 = vsub.f32 %v890, %v918
    %v939 = vsub.f32 %v891, %v920
    %v940 = vsub.f32 %v892, %v922
    %v941 = vsub.f32 %v893, %v924
    %v942 = vsub.f32 %v894, %v926
    %v943 = vmul.f32 %v927, 1.442695
    %v944 = vpow.pop %v943
    %v945 = vmul.f32 %v928, 1.442695
    %v946 = vpow.pop %v945
    %v947 = vmul.f32 %v929, 1.442695
    %v948 = vpow.pop %v947
    %v949 = vmul.f32 %v930, 1.442695
    %v950 = vpow.pop %v949
    %v951 = vmul.f32 %v931, 1.442695
    %v952 = vpow.pop %v951
    %v953 = vmul.f32 %v932, 1.442695
    %v954 = vpow.pop %v953
    %v955 = vmul.f32 %v933, 1.442695
    %v956 = vpow.pop %v955
    %v957 = vmul.f32 %v934, 1.442695
    %v958 = vpow.pop %v957
    %v959 = vmul.f32 %v935, 1.442695
    %v960 = vpow.pop %v959
    %v961 = vmul.f32 %v936, 1.442695
    %v962 = vpow.pop %v961
    %v963 = vmul.f32 %v937, 1.442695
    %v964 = vpow.pop %v963
    %v965 = vmul.f32 %v938, 1.442695
    %v966 = vpow.pop %v965
    %v967 = vmul.f32 %v939, 1.442695
    %v968 = vpow.pop %v967
    %v969 = vmul.f32 %v940, 1.442695
    %v970 = vpow.pop %v969
    %v971 = vmul.f32 %v941, 1.442695
    %v972 = vpow.pop %v971
    %v973 = vmul.f32 %v942, 1.442695
    %v974 = vpow.pop %v973
    %v975 = vpack.c.bf16 %v946, %v944
    %v976 = vpack.c.bf16 %v950, %v948
    %v977 = vpack.c.bf16 %v954, %v952
    %v978 = vpack.c.bf16 %v958, %v956
    %v979 = vpack.c.bf16 %v962, %v960
    %v980 = vpack.c.bf16 %v966, %v964
    %v981 = vpack.c.bf16 %v970, %v968
    %v982 = vpack.c.bf16 %v974, %v972
    %983 = vmatprep.subr.bf16.mxu0 0
    %984 = vmatpush1.bf16.msra.mxu0 %v584
    %985 = vmatprep.subr.bf16.mxu0 0
    %986 = vmatpush1.bf16.msra.mxu0 %v587
    %987 = vmatprep.subr.bf16.mxu0 0
    %988 = vmatpush1.bf16.msra.mxu0 %v590
    %989 = vmatprep.subr.bf16.mxu0 0
    %990 = vmatpush1.bf16.msra.mxu0 %v593
    %991 = vmatprep.subr.bf16.mxu0 0
    %992 = vmatpush1.bf16.msra.mxu0 %v596
    %993 = vmatprep.subr.bf16.mxu0 0
    %994 = vmatpush1.bf16.msra.mxu0 %v599
    %995 = vmatprep.subr.bf16.mxu0 0
    %996 = vmatpush1.bf16.msra.mxu0 %v602
    %997 = vmatprep.subr.bf16.mxu0 0
    %998 = vmatpush1.bf16.msra.mxu0 %v605
    %999 = vmatprep.subr.bf16.mxu0 0
    %1000 = vmatpush1.bf16.msra.mxu0 0
    %1001 = vmatprep.subr.bf16.mxu0 0
    %1002 = vmatpush1.bf16.msra.mxu0 0
    %1003 = vmatprep.subr.bf16.mxu0 0
    %1004 = vmatpush1.bf16.msra.mxu0 0
    %1005 = vmatprep.subr.bf16.mxu0 0
    %1006 = vmatpush1.bf16.msra.mxu0 0
    %1007 = vmatprep.subr.bf16.mxu0 0
    %1008 = vmatpush1.bf16.msra.mxu0 0
    %1009 = vmatprep.subr.bf16.mxu0 0
    %1010 = vmatpush1.bf16.msra.mxu0 0
    %1011 = vmatprep.subr.bf16.mxu0 0
    %1012 = vmatpush1.bf16.msra.mxu0 0
    %1013 = vmatprep.subr.bf16.mxu0 0
    %1014 = vmatpush1.bf16.msra.mxu0 0
    %1015 = vmatprep.mubr.bf16.mxu0 0
    %1016 = vmatmul.mubr.bf16.gmra.mrb[0].mxu0 %v975
    %v1017 = vpop.f32.mrb[0].mxu0
    %v1018 = vadd.f32 0.0, %v1017
    %v1019 = vpop.f32.mrb[0].mxu0
    %v1020 = vpop.f32.mrb[0].mxu0
    %v1021 = vadd.f32 0.0, %v1020
    %v1022 = vpop.f32.mrb[0].mxu0
    %1023 = vmatprep.mubr.bf16.mxu0 0
    %1024 = vmatmul.mubr.bf16.gmra.mrb[0].mxu0 %v976
    %v1025 = vpop.f32.mrb[0].mxu0
    %v1026 = vadd.f32 0.0, %v1025
    %v1027 = vpop.f32.mrb[0].mxu0
    %v1028 = vpop.f32.mrb[0].mxu0
    %v1029 = vadd.f32 0.0, %v1028
    %v1030 = vpop.f32.mrb[0].mxu0
    %1031 = vmatprep.mubr.bf16.mxu0 0
    %1032 = vmatmul.mubr.bf16.gmra.mrb[0].mxu0 %v977
    %v1033 = vpop.f32.mrb[0].mxu0
    %v1034 = vadd.f32 0.0, %v1033
    %v1035 = vpop.f32.mrb[0].mxu0
    %v1036 = vpop.f32.mrb[0].mxu0
    %v1037 = vadd.f32 0.0, %v1036
    %v1038 = vpop.f32.mrb[0].mxu0
    %1039 = vmatprep.mubr.bf16.mxu0 0
    %1040 = vmatmul.mubr.bf16.gmra.mrb[0].mxu0 %v978
    %v1041 = vpop.f32.mrb[0].mxu0
    %v1042 = vadd.f32 0.0, %v1041
    %v1043 = vpop.f32.mrb[0].mxu0
    %v1044 = vpop.f32.mrb[0].mxu0
    %v1045 = vadd.f32 0.0, %v1044
    %v1046 = vpop.f32.mrb[0].mxu0
    %1047 = vmatprep.mubr.bf16.mxu0 0
    %1048 = vmatmul.mubr.bf16.gmra.mrb[0].mxu0 %v979
    %v1049 = vpop.f32.mrb[0].mxu0
    %v1050 = vadd.f32 0.0, %v1049
    %v1051 = vpop.f32.mrb[0].mxu0
    %v1052 = vpop.f32.mrb[0].mxu0
    %v1053 = vadd.f32 0.0, %v1052
    %v1054 = vpop.f32.mrb[0].mxu0
    %1055 = vmatprep.mubr.bf16.mxu0 0
    %1056 = vmatmul.mubr.bf16.gmra.mrb[0].mxu0 %v980
    %v1057 = vpop.f32.mrb[0].mxu0
    %v1058 = vadd.f32 0.0, %v1057
    %v1059 = vpop.f32.mrb[0].mxu0
    %v1060 = vpop.f32.mrb[0].mxu0
    %v1061 = vadd.f32 0.0, %v1060
    %v1062 = vpop.f32.mrb[0].mxu0
    %1063 = vmatprep.mubr.bf16.mxu0 0
    %1064 = vmatmul.mubr.bf16.gmra.mrb[0].mxu0 %v981
    %v1065 = vpop.f32.mrb[0].mxu0
    %v1066 = vadd.f32 0.0, %v1065
    %v1067 = vpop.f32.mrb[0].mxu0
    %v1068 = vpop.f32.mrb[0].mxu0
    %v1069 = vadd.f32 0.0, %v1068
    %v1070 = vpop.f32.mrb[0].mxu0
    %1071 = vmatprep.mubr.bf16.mxu0 0
    %1072 = vmatmul.mubr.bf16.gmra.mrb[0].mxu0 %v982
    %v1073 = vpop.f32.mrb[0].mxu0
    %v1074 = vadd.f32 0.0, %v1073
    %v1075 = vpop.f32.mrb[0].mxu0
    %v1076 = vpop.f32.mrb[0].mxu0
    %v1077 = vadd.f32 0.0, %v1076
    %v1078 = vpop.f32.mrb[0].mxu0
    %1079 = vdwg.mxu0
    %v1080 = vrcp.pop %v1018
    %v1081 = vrcp.pop %v1021
    %v1082 = vrcp.pop %v1026
    %v1083 = vrcp.pop %v1029
    %v1084 = vrcp.pop %v1034
    %v1085 = vrcp.pop %v1037
    %v1086 = vrcp.pop %v1042
    %v1087 = vrcp.pop %v1045
    %v1088 = vrcp.pop %v1050
    %v1089 = vrcp.pop %v1053
    %v1090 = vrcp.pop %v1058
    %v1091 = vrcp.pop %v1061
    %v1092 = vrcp.pop %v1066
    %v1093 = vrcp.pop %v1069
    %v1094 = vrcp.pop %v1074
    %v1095 = vrcp.pop %v1077
    %1097 = vset.pattern.permute.xlu0 64
    %1098 = vperm.xlu0 %1097, %v1080
    %v1099 = vpop.permute.xlu0 %1098
    %1102 = vset.pattern.permute.xlu0 64
    %1103 = vperm.xlu0 %1102, %v1081
    %v1104 = vpop.permute.xlu0 %1103
    %1107 = vset.pattern.permute.xlu0 64
    %1108 = vperm.xlu0 %1107, %v1082
    %v1109 = vpop.permute.xlu0 %1108
    %1112 = vset.pattern.permute.xlu0 64
    %1113 = vperm.xlu0 %1112, %v1083
    %v1114 = vpop.permute.xlu0 %1113
    %1117 = vset.pattern.permute.xlu0 64
    %1118 = vperm.xlu0 %1117, %v1084
    %v1119 = vpop.permute.xlu0 %1118
    %1122 = vset.pattern.permute.xlu0 64
    %1123 = vperm.xlu0 %1122, %v1085
    %v1124 = vpop.permute.xlu0 %1123
    %1127 = vset.pattern.permute.xlu0 64
    %1128 = vperm.xlu0 %1127, %v1086
    %v1129 = vpop.permute.xlu0 %1128
    %1132 = vset.pattern.permute.xlu0 64
    %1133 = vperm.xlu0 %1132, %v1087
    %v1134 = vpop.permute.xlu0 %1133
    %1137 = vset.pattern.permute.xlu0 64
    %1138 = vperm.xlu0 %1137, %v1088
    %v1139 = vpop.permute.xlu0 %1138
    %1142 = vset.pattern.permute.xlu0 64
    %1143 = vperm.xlu0 %1142, %v1089
    %v1144 = vpop.permute.xlu0 %1143
    %1147 = vset.pattern.permute.xlu0 64
    %1148 = vperm.xlu0 %1147, %v1090
    %v1149 = vpop.permute.xlu0 %1148
    %1152 = vset.pattern.permute.xlu0 64
    %1153 = vperm.xlu0 %1152, %v1091
    %v1154 = vpop.permute.xlu0 %1153
    %1157 = vset.pattern.permute.xlu0 64
    %1158 = vperm.xlu0 %1157, %v1092
    %v1159 = vpop.permute.xlu0 %1158
    %1162 = vset.pattern.permute.xlu0 64
    %1163 = vperm.xlu0 %1162, %v1093
    %v1164 = vpop.permute.xlu0 %1163
    %1167 = vset.pattern.permute.xlu0 64
    %1168 = vperm.xlu0 %1167, %v1094
    %v1169 = vpop.permute.xlu0 %1168
    %1172 = vset.pattern.permute.xlu0 64
    %1173 = vperm.xlu0 %1172, %v1095
    %v1174 = vpop.permute.xlu0 %1173
    %v1176 = vmul.f32 %v1018, %v1099
    %v1177 = vmul.f32 %v1021, %v1104
    %v1178 = vmul.f32 %v1026, %v1109
    %v1179 = vmul.f32 %v1029, %v1114
    %v1180 = vmul.f32 %v1034, %v1119
    %v1181 = vmul.f32 %v1037, %v1124
    %v1182 = vmul.f32 %v1042, %v1129
    %v1183 = vmul.f32 %v1045, %v1134
    %v1184 = vmul.f32 %v1050, %v1139
    %v1185 = vmul.f32 %v1053, %v1144
    %v1186 = vmul.f32 %v1058, %v1149
    %v1187 = vmul.f32 %v1061, %v1154
    %v1188 = vmul.f32 %v1066, %v1159
    %v1189 = vmul.f32 %v1069, %v1164
    %v1190 = vmul.f32 %v1074, %v1169
    %v1191 = vmul.f32 %v1077, %v1174
    %vm1192 = vcmp.gt.f32.partialorder %v1176, 0.0
    %vm1193 = vcmp.gt.f32.partialorder %v1177, 0.0
    %vm1194 = vcmp.gt.f32.partialorder %v1178, 0.0
    %vm1195 = vcmp.gt.f32.partialorder %v1179, 0.0
    %vm1196 = vcmp.gt.f32.partialorder %v1180, 0.0
    %vm1197 = vcmp.gt.f32.partialorder %v1181, 0.0
    %vm1198 = vcmp.gt.f32.partialorder %v1182, 0.0
    %vm1199 = vcmp.gt.f32.partialorder %v1183, 0.0
    %vm1200 = vcmp.gt.f32.partialorder %v1184, 0.0
    %vm1201 = vcmp.gt.f32.partialorder %v1185, 0.0
    %vm1202 = vcmp.gt.f32.partialorder %v1186, 0.0
    %vm1203 = vcmp.gt.f32.partialorder %v1187, 0.0
    %vm1204 = vcmp.gt.f32.partialorder %v1188, 0.0
    %vm1205 = vcmp.gt.f32.partialorder %v1189, 0.0
    %vm1206 = vcmp.gt.f32.partialorder %v1190, 0.0
    %vm1207 = vcmp.gt.f32.partialorder %v1191, 0.0
    %v1208 = vmul.f32 %v1176, 1.442695
    %v1209 = vpow.pop %v1208
    %v1210 = vmul.f32 %v1177, 1.442695
    %v1211 = vpow.pop %v1210
    %v1212 = vmul.f32 %v1178, 1.442695
    %v1213 = vpow.pop %v1212
    %v1214 = vmul.f32 %v1179, 1.442695
    %v1215 = vpow.pop %v1214
    %v1216 = vmul.f32 %v1180, 1.442695
    %v1217 = vpow.pop %v1216
    %v1218 = vmul.f32 %v1181, 1.442695
    %v1219 = vpow.pop %v1218
    %v1220 = vmul.f32 %v1182, 1.442695
    %v1221 = vpow.pop %v1220
    %v1222 = vmul.f32 %v1183, 1.442695
    %v1223 = vpow.pop %v1222
    %v1224 = vmul.f32 %v1184, 1.442695
    %v1225 = vpow.pop %v1224
    %v1226 = vmul.f32 %v1185, 1.442695
    %v1227 = vpow.pop %v1226
    %v1228 = vmul.f32 %v1186, 1.442695
    %v1229 = vpow.pop %v1228
    %v1230 = vmul.f32 %v1187, 1.442695
    %v1231 = vpow.pop %v1230
    %v1232 = vmul.f32 %v1188, 1.442695
    %v1233 = vpow.pop %v1232
    %v1234 = vmul.f32 %v1189, 1.442695
    %v1235 = vpow.pop %v1234
    %v1236 = vmul.f32 %v1190, 1.442695
    %v1237 = vpow.pop %v1236
    %v1238 = vmul.f32 %v1191, 1.442695
    %v1239 = vpow.pop %v1238
    %v1240 = vsub.f32 %v1209, 1.0
    %v1241 = vsub.f32 %v1211, 1.0
    %v1242 = vsub.f32 %v1213, 1.0
    %v1243 = vsub.f32 %v1215, 1.0
    %v1244 = vsub.f32 %v1217, 1.0
    %v1245 = vsub.f32 %v1219, 1.0
    %v1246 = vsub.f32 %v1221, 1.0
    %v1247 = vsub.f32 %v1223, 1.0
    %v1248 = vsub.f32 %v1225, 1.0
    %v1249 = vsub.f32 %v1227, 1.0
    %v1250 = vsub.f32 %v1229, 1.0
    %v1251 = vsub.f32 %v1231, 1.0
    %v1252 = vsub.f32 %v1233, 1.0
    %v1253 = vsub.f32 %v1235, 1.0
    %v1254 = vsub.f32 %v1237, 1.0
    %v1255 = vsub.f32 %v1239, 1.0
    %v1256 = vsel %vm1192, %v1176, %v1240
    %v1257 = vsel %vm1193, %v1177, %v1241
    %v1258 = vsel %vm1194, %v1178, %v1242
    %v1259 = vsel %vm1195, %v1179, %v1243
    %v1260 = vsel %vm1196, %v1180, %v1244
    %v1261 = vsel %vm1197, %v1181, %v1245
    %v1262 = vsel %vm1198, %v1182, %v1246
    %v1263 = vsel %vm1199, %v1183, %v1247
    %v1264 = vsel %vm1200, %v1184, %v1248
    %v1265 = vsel %vm1201, %v1185, %v1249
    %v1266 = vsel %vm1202, %v1186, %v1250
    %v1267 = vsel %vm1203, %v1187, %v1251
    %v1268 = vsel %vm1204, %v1188, %v1252
    %v1269 = vsel %vm1205, %v1189, %v1253
    %v1270 = vsel %vm1206, %v1190, %v1254
    %v1271 = vsel %vm1207, %v1191, %v1255
    %1272 = vset.pattern.permute.xlu0 1
    %1273 = vperm.xlu0 %1272, %v488
    %v1274 = vpop.permute.xlu0 %1273
    %1276 = vset.pattern.permute.xlu0 1
    %1277 = vperm.xlu0 %1276, %v491
    %v1278 = vpop.permute.xlu0 %1277
    %1280 = vset.pattern.permute.xlu0 1
    %1281 = vperm.xlu0 %1280, %v496
    %v1282 = vpop.permute.xlu0 %1281
    %1284 = vset.pattern.permute.xlu0 1
    %1285 = vperm.xlu0 %1284, %v499
    %v1286 = vpop.permute.xlu0 %1285
    %1288 = vset.pattern.permute.xlu0 1
    %1289 = vperm.xlu0 %1288, %v504
    %v1290 = vpop.permute.xlu0 %1289
    %1292 = vset.pattern.permute.xlu0 1
    %1293 = vperm.xlu0 %1292, %v507
    %v1294 = vpop.permute.xlu0 %1293
    %1296 = vset.pattern.permute.xlu0 1
    %1297 = vperm.xlu0 %1296, %v512
    %v1298 = vpop.permute.xlu0 %1297
    %1300 = vset.pattern.permute.xlu0 1
    %1301 = vperm.xlu0 %1300, %v515
    %v1302 = vpop.permute.xlu0 %1301
    %1304 = vset.pattern.permute.xlu0 1
    %1305 = vperm.xlu0 %1304, %v520
    %v1306 = vpop.permute.xlu0 %1305
    %1308 = vset.pattern.permute.xlu0 1
    %1309 = vperm.xlu0 %1308, %v523
    %v1310 = vpop.permute.xlu0 %1309
    %1312 = vset.pattern.permute.xlu0 1
    %1313 = vperm.xlu0 %1312, %v528
    %v1314 = vpop.permute.xlu0 %1313
    %1316 = vset.pattern.permute.xlu0 1
    %1317 = vperm.xlu0 %1316, %v531
    %v1318 = vpop.permute.xlu0 %1317
    %1320 = vset.pattern.permute.xlu0 1
    %1321 = vperm.xlu0 %1320, %v536
    %v1322 = vpop.permute.xlu0 %1321
    %1324 = vset.pattern.permute.xlu0 1
    %1325 = vperm.xlu0 %1324, %v539
    %v1326 = vpop.permute.xlu0 %1325
    %1328 = vset.pattern.permute.xlu0 1
    %1329 = vperm.xlu0 %1328, %v544
    %v1330 = vpop.permute.xlu0 %1329
    %1332 = vset.pattern.permute.xlu0 1
    %1333 = vperm.xlu0 %1332, %v547
    %v1334 = vpop.permute.xlu0 %1333
    %v1336 = vlaneseq
    %v1337 = vshrl.u32 %v1336, 7
    %v1338 = vsub.s32 1, %v1337
    %v1339 = vrot.slane %v331, %v1338
    %v1340 = vadd.f32 %v1274, %v1339
    %v1341 = vadd.f32 %v1278, %v1339
    %v1342 = vadd.f32 %v1282, %v1339
    %v1343 = vadd.f32 %v1286, %v1339
    %v1344 = vadd.f32 %v1290, %v1339
    %v1345 = vadd.f32 %v1294, %v1339
    %v1346 = vadd.f32 %v1298, %v1339
    %v1347 = vadd.f32 %v1302, %v1339
    %v1348 = vadd.f32 %v1306, %v1339
    %v1349 = vadd.f32 %v1310, %v1339
    %v1350 = vadd.f32 %v1314, %v1339
    %v1351 = vadd.f32 %v1318, %v1339
    %v1352 = vadd.f32 %v1322, %v1339
    %v1353 = vadd.f32 %v1326, %v1339
    %v1354 = vadd.f32 %v1330, %v1339
    %v1355 = vadd.f32 %v1334, %v1339
    %v1356 = vmul.f32 %v1340, 0.2
    %v1357 = vmul.f32 %v1341, 0.2
    %v1358 = vmul.f32 %v1342, 0.2
    %v1359 = vmul.f32 %v1343, 0.2
    %v1360 = vmul.f32 %v1344, 0.2
    %v1361 = vmul.f32 %v1345, 0.2
    %v1362 = vmul.f32 %v1346, 0.2
    %v1363 = vmul.f32 %v1347, 0.2
    %v1364 = vmul.f32 %v1348, 0.2
    %v1365 = vmul.f32 %v1349, 0.2
    %v1366 = vmul.f32 %v1350, 0.2
    %v1367 = vmul.f32 %v1351, 0.2
    %v1368 = vmul.f32 %v1352, 0.2
    %v1369 = vmul.f32 %v1353, 0.2
    %v1370 = vmul.f32 %v1354, 0.2
    %v1371 = vmul.f32 %v1355, 0.2
    %v1372 = vmax.f32 %v1340, %v1356
    %v1373 = vmax.f32 %v1341, %v1357
    %v1374 = vmax.f32 %v1342, %v1358
    %v1375 = vmax.f32 %v1343, %v1359
    %v1376 = vmax.f32 %v1344, %v1360
    %v1377 = vmax.f32 %v1345, %v1361
    %v1378 = vmax.f32 %v1346, %v1362
    %v1379 = vmax.f32 %v1347, %v1363
    %v1380 = vmax.f32 %v1348, %v1364
    %v1381 = vmax.f32 %v1349, %v1365
    %v1382 = vmax.f32 %v1350, %v1366
    %v1383 = vmax.f32 %v1351, %v1367
    %v1384 = vmax.f32 %v1352, %v1368
    %v1385 = vmax.f32 %v1353, %v1369
    %v1386 = vmax.f32 %v1354, %v1370
    %v1387 = vmax.f32 %v1355, %v1371
    %v1388 = vsel %vm863, %v1372, -1e+30
    %v1389 = vsel %vm864, %v1373, -1e+30
    %v1390 = vsel %vm865, %v1374, -1e+30
    %v1391 = vsel %vm866, %v1375, -1e+30
    %v1392 = vsel %vm867, %v1376, -1e+30
    %v1393 = vsel %vm868, %v1377, -1e+30
    %v1394 = vsel %vm869, %v1378, -1e+30
    %v1395 = vsel %vm870, %v1379, -1e+30
    %v1396 = vsel %vm871, %v1380, -1e+30
    %v1397 = vsel %vm872, %v1381, -1e+30
    %v1398 = vsel %vm873, %v1382, -1e+30
    %v1399 = vsel %vm874, %v1383, -1e+30
    %v1400 = vsel %vm875, %v1384, -1e+30
    %v1401 = vsel %vm876, %v1385, -1e+30
    %v1402 = vsel %vm877, %v1386, -1e+30
    %v1403 = vsel %vm878, %v1387, -1e+30
    %1404 = vmax.xlane.f32.xlu0 %v1388
    %v1405 = vpop.xlane.xlu0 %1404
    %1406 = vmax.xlane.f32.xlu0 %v1389
    %v1407 = vpop.xlane.xlu0 %1406
    %1408 = vmax.xlane.f32.xlu0 %v1390
    %v1409 = vpop.xlane.xlu0 %1408
    %1410 = vmax.xlane.f32.xlu0 %v1391
    %v1411 = vpop.xlane.xlu0 %1410
    %1412 = vmax.xlane.f32.xlu0 %v1392
    %v1413 = vpop.xlane.xlu0 %1412
    %1414 = vmax.xlane.f32.xlu0 %v1393
    %v1415 = vpop.xlane.xlu0 %1414
    %1416 = vmax.xlane.f32.xlu0 %v1394
    %v1417 = vpop.xlane.xlu0 %1416
    %1418 = vmax.xlane.f32.xlu0 %v1395
    %v1419 = vpop.xlane.xlu0 %1418
    %1420 = vmax.xlane.f32.xlu0 %v1396
    %v1421 = vpop.xlane.xlu0 %1420
    %1422 = vmax.xlane.f32.xlu0 %v1397
    %v1423 = vpop.xlane.xlu0 %1422
    %1424 = vmax.xlane.f32.xlu0 %v1398
    %v1425 = vpop.xlane.xlu0 %1424
    %1426 = vmax.xlane.f32.xlu0 %v1399
    %v1427 = vpop.xlane.xlu0 %1426
    %1428 = vmax.xlane.f32.xlu0 %v1400
    %v1429 = vpop.xlane.xlu0 %1428
    %1430 = vmax.xlane.f32.xlu0 %v1401
    %v1431 = vpop.xlane.xlu0 %1430
    %1432 = vmax.xlane.f32.xlu0 %v1402
    %v1433 = vpop.xlane.xlu0 %1432
    %1434 = vmax.xlane.f32.xlu0 %v1403
    %v1435 = vpop.xlane.xlu0 %1434
    %v1436 = vsub.f32 %v1388, %v1405
    %v1437 = vsub.f32 %v1389, %v1407
    %v1438 = vsub.f32 %v1390, %v1409
    %v1439 = vsub.f32 %v1391, %v1411
    %v1440 = vsub.f32 %v1392, %v1413
    %v1441 = vsub.f32 %v1393, %v1415
    %v1442 = vsub.f32 %v1394, %v1417
    %v1443 = vsub.f32 %v1395, %v1419
    %v1444 = vsub.f32 %v1396, %v1421
    %v1445 = vsub.f32 %v1397, %v1423
    %v1446 = vsub.f32 %v1398, %v1425
    %v1447 = vsub.f32 %v1399, %v1427
    %v1448 = vsub.f32 %v1400, %v1429
    %v1449 = vsub.f32 %v1401, %v1431
    %v1450 = vsub.f32 %v1402, %v1433
    %v1451 = vsub.f32 %v1403, %v1435
    %v1452 = vmul.f32 %v1436, 1.442695
    %v1453 = vpow.pop %v1452
    %v1454 = vmul.f32 %v1437, 1.442695
    %v1455 = vpow.pop %v1454
    %v1456 = vmul.f32 %v1438, 1.442695
    %v1457 = vpow.pop %v1456
    %v1458 = vmul.f32 %v1439, 1.442695
    %v1459 = vpow.pop %v1458
    %v1460 = vmul.f32 %v1440, 1.442695
    %v1461 = vpow.pop %v1460
    %v1462 = vmul.f32 %v1441, 1.442695
    %v1463 = vpow.pop %v1462
    %v1464 = vmul.f32 %v1442, 1.442695
    %v1465 = vpow.pop %v1464
    %v1466 = vmul.f32 %v1443, 1.442695
    %v1467 = vpow.pop %v1466
    %v1468 = vmul.f32 %v1444, 1.442695
    %v1469 = vpow.pop %v1468
    %v1470 = vmul.f32 %v1445, 1.442695
    %v1471 = vpow.pop %v1470
    %v1472 = vmul.f32 %v1446, 1.442695
    %v1473 = vpow.pop %v1472
    %v1474 = vmul.f32 %v1447, 1.442695
    %v1475 = vpow.pop %v1474
    %v1476 = vmul.f32 %v1448, 1.442695
    %v1477 = vpow.pop %v1476
    %v1478 = vmul.f32 %v1449, 1.442695
    %v1479 = vpow.pop %v1478
    %v1480 = vmul.f32 %v1450, 1.442695
    %v1481 = vpow.pop %v1480
    %v1482 = vmul.f32 %v1451, 1.442695
    %v1483 = vpow.pop %v1482
    %v1484 = vpack.c.bf16 %v1455, %v1453
    %v1485 = vpack.c.bf16 %v1459, %v1457
    %v1486 = vpack.c.bf16 %v1463, %v1461
    %v1487 = vpack.c.bf16 %v1467, %v1465
    %v1488 = vpack.c.bf16 %v1471, %v1469
    %v1489 = vpack.c.bf16 %v1475, %v1473
    %v1490 = vpack.c.bf16 %v1479, %v1477
    %v1491 = vpack.c.bf16 %v1483, %v1481
    %1492 = vmatprep.subr.bf16.mxu0 0
    %1493 = vmatpush1.bf16.msra.mxu0 %v608
    %1494 = vmatprep.subr.bf16.mxu0 0
    %1495 = vmatpush1.bf16.msra.mxu0 %v611
    %1496 = vmatprep.subr.bf16.mxu0 0
    %1497 = vmatpush1.bf16.msra.mxu0 %v614
    %1498 = vmatprep.subr.bf16.mxu0 0
    %1499 = vmatpush1.bf16.msra.mxu0 %v617
    %1500 = vmatprep.subr.bf16.mxu0 0
    %1501 = vmatpush1.bf16.msra.mxu0 %v620
    %1502 = vmatprep.subr.bf16.mxu0 0
    %1503 = vmatpush1.bf16.msra.mxu0 %v623
    %1504 = vmatprep.subr.bf16.mxu0 0
    %1505 = vmatpush1.bf16.msra.mxu0 %v626
    %1506 = vmatprep.subr.bf16.mxu0 0
    %1507 = vmatpush1.bf16.msra.mxu0 %v629
    %1508 = vmatprep.subr.bf16.mxu0 0
    %1509 = vmatpush1.bf16.msra.mxu0 0
    %1510 = vmatprep.subr.bf16.mxu0 0
    %1511 = vmatpush1.bf16.msra.mxu0 0
    %1512 = vmatprep.subr.bf16.mxu0 0
    %1513 = vmatpush1.bf16.msra.mxu0 0
    %1514 = vmatprep.subr.bf16.mxu0 0
    %1515 = vmatpush1.bf16.msra.mxu0 0
    %1516 = vmatprep.subr.bf16.mxu0 0
    %1517 = vmatpush1.bf16.msra.mxu0 0
    %1518 = vmatprep.subr.bf16.mxu0 0
    %1519 = vmatpush1.bf16.msra.mxu0 0
    %1520 = vmatprep.subr.bf16.mxu0 0
    %1521 = vmatpush1.bf16.msra.mxu0 0
    %1522 = vmatprep.subr.bf16.mxu0 0
    %1523 = vmatpush1.bf16.msra.mxu0 0
    %1524 = vmatprep.mubr.bf16.mxu0 0
    %1525 = vmatmul.mubr.bf16.gmra.mrb[0].mxu0 %v1484
    %v1526 = vpop.f32.mrb[0].mxu0
    %v1527 = vadd.f32 0.0, %v1526
    %v1528 = vpop.f32.mrb[0].mxu0
    %v1529 = vpop.f32.mrb[0].mxu0
    %v1530 = vadd.f32 0.0, %v1529
    %v1531 = vpop.f32.mrb[0].mxu0
    %1532 = vmatprep.mubr.bf16.mxu0 0
    %1533 = vmatmul.mubr.bf16.gmra.mrb[0].mxu0 %v1485
    %v1534 = vpop.f32.mrb[0].mxu0
    %v1535 = vadd.f32 0.0, %v1534
    %v1536 = vpop.f32.mrb[0].mxu0
    %v1537 = vpop.f32.mrb[0].mxu0
    %v1538 = vadd.f32 0.0, %v1537
    %v1539 = vpop.f32.mrb[0].mxu0
    %1540 = vmatprep.mubr.bf16.mxu0 0
    %1541 = vmatmul.mubr.bf16.gmra.mrb[0].mxu0 %v1486
    %v1542 = vpop.f32.mrb[0].mxu0
    %v1543 = vadd.f32 0.0, %v1542
    %v1544 = vpop.f32.mrb[0].mxu0
    %v1545 = vpop.f32.mrb[0].mxu0
    %v1546 = vadd.f32 0.0, %v1545
    %v1547 = vpop.f32.mrb[0].mxu0
    %1548 = vmatprep.mubr.bf16.mxu0 0
    %1549 = vmatmul.mubr.bf16.gmra.mrb[0].mxu0 %v1487
    %v1550 = vpop.f32.mrb[0].mxu0
    %v1551 = vadd.f32 0.0, %v1550
    %v1552 = vpop.f32.mrb[0].mxu0
    %v1553 = vpop.f32.mrb[0].mxu0
    %v1554 = vadd.f32 0.0, %v1553
    %v1555 = vpop.f32.mrb[0].mxu0
    %1556 = vmatprep.mubr.bf16.mxu0 0
    %1557 = vmatmul.mubr.bf16.gmra.mrb[0].mxu0 %v1488
    %v1558 = vpop.f32.mrb[0].mxu0
    %v1559 = vadd.f32 0.0, %v1558
    %v1560 = vpop.f32.mrb[0].mxu0
    %v1561 = vpop.f32.mrb[0].mxu0
    %v1562 = vadd.f32 0.0, %v1561
    %v1563 = vpop.f32.mrb[0].mxu0
    %1564 = vmatprep.mubr.bf16.mxu0 0
    %1565 = vmatmul.mubr.bf16.gmra.mrb[0].mxu0 %v1489
    %v1566 = vpop.f32.mrb[0].mxu0
    %v1567 = vadd.f32 0.0, %v1566
    %v1568 = vpop.f32.mrb[0].mxu0
    %v1569 = vpop.f32.mrb[0].mxu0
    %v1570 = vadd.f32 0.0, %v1569
    %v1571 = vpop.f32.mrb[0].mxu0
    %1572 = vmatprep.mubr.bf16.mxu0 0
    %1573 = vmatmul.mubr.bf16.gmra.mrb[0].mxu0 %v1490
    %v1574 = vpop.f32.mrb[0].mxu0
    %v1575 = vadd.f32 0.0, %v1574
    %v1576 = vpop.f32.mrb[0].mxu0
    %v1577 = vpop.f32.mrb[0].mxu0
    %v1578 = vadd.f32 0.0, %v1577
    %v1579 = vpop.f32.mrb[0].mxu0
    %1580 = vmatprep.mubr.bf16.mxu0 0
    %1581 = vmatmul.mubr.bf16.gmra.mrb[0].mxu0 %v1491
    %v1582 = vpop.f32.mrb[0].mxu0
    %v1583 = vadd.f32 0.0, %v1582
    %v1584 = vpop.f32.mrb[0].mxu0
    %v1585 = vpop.f32.mrb[0].mxu0
    %v1586 = vadd.f32 0.0, %v1585
    %v1587 = vpop.f32.mrb[0].mxu0
    %1588 = vdwg.mxu0
    %v1589 = vrcp.pop %v1527
    %v1590 = vrcp.pop %v1530
    %v1591 = vrcp.pop %v1535
    %v1592 = vrcp.pop %v1538
    %v1593 = vrcp.pop %v1543
    %v1594 = vrcp.pop %v1546
    %v1595 = vrcp.pop %v1551
    %v1596 = vrcp.pop %v1554
    %v1597 = vrcp.pop %v1559
    %v1598 = vrcp.pop %v1562
    %v1599 = vrcp.pop %v1567
    %v1600 = vrcp.pop %v1570
    %v1601 = vrcp.pop %v1575
    %v1602 = vrcp.pop %v1578
    %v1603 = vrcp.pop %v1583
    %v1604 = vrcp.pop %v1586
    %1606 = vset.pattern.permute.xlu0 64
    %1607 = vperm.xlu0 %1606, %v1589
    %v1608 = vpop.permute.xlu0 %1607
    %1611 = vset.pattern.permute.xlu0 64
    %1612 = vperm.xlu0 %1611, %v1590
    %v1613 = vpop.permute.xlu0 %1612
    %1616 = vset.pattern.permute.xlu0 64
    %1617 = vperm.xlu0 %1616, %v1591
    %v1618 = vpop.permute.xlu0 %1617
    %1621 = vset.pattern.permute.xlu0 64
    %1622 = vperm.xlu0 %1621, %v1592
    %v1623 = vpop.permute.xlu0 %1622
    %1626 = vset.pattern.permute.xlu0 64
    %1627 = vperm.xlu0 %1626, %v1593
    %v1628 = vpop.permute.xlu0 %1627
    %1631 = vset.pattern.permute.xlu0 64
    %1632 = vperm.xlu0 %1631, %v1594
    %v1633 = vpop.permute.xlu0 %1632
    %1636 = vset.pattern.permute.xlu0 64
    %1637 = vperm.xlu0 %1636, %v1595
    %v1638 = vpop.permute.xlu0 %1637
    %1641 = vset.pattern.permute.xlu0 64
    %1642 = vperm.xlu0 %1641, %v1596
    %v1643 = vpop.permute.xlu0 %1642
    %1646 = vset.pattern.permute.xlu0 64
    %1647 = vperm.xlu0 %1646, %v1597
    %v1648 = vpop.permute.xlu0 %1647
    %1651 = vset.pattern.permute.xlu0 64
    %1652 = vperm.xlu0 %1651, %v1598
    %v1653 = vpop.permute.xlu0 %1652
    %1656 = vset.pattern.permute.xlu0 64
    %1657 = vperm.xlu0 %1656, %v1599
    %v1658 = vpop.permute.xlu0 %1657
    %1661 = vset.pattern.permute.xlu0 64
    %1662 = vperm.xlu0 %1661, %v1600
    %v1663 = vpop.permute.xlu0 %1662
    %1666 = vset.pattern.permute.xlu0 64
    %1667 = vperm.xlu0 %1666, %v1601
    %v1668 = vpop.permute.xlu0 %1667
    %1671 = vset.pattern.permute.xlu0 64
    %1672 = vperm.xlu0 %1671, %v1602
    %v1673 = vpop.permute.xlu0 %1672
    %1676 = vset.pattern.permute.xlu0 64
    %1677 = vperm.xlu0 %1676, %v1603
    %v1678 = vpop.permute.xlu0 %1677
    %1681 = vset.pattern.permute.xlu0 64
    %1682 = vperm.xlu0 %1681, %v1604
    %v1683 = vpop.permute.xlu0 %1682
    %v1685 = vmul.f32 %v1527, %v1608
    %v1686 = vmul.f32 %v1530, %v1613
    %v1687 = vmul.f32 %v1535, %v1618
    %v1688 = vmul.f32 %v1538, %v1623
    %v1689 = vmul.f32 %v1543, %v1628
    %v1690 = vmul.f32 %v1546, %v1633
    %v1691 = vmul.f32 %v1551, %v1638
    %v1692 = vmul.f32 %v1554, %v1643
    %v1693 = vmul.f32 %v1559, %v1648
    %v1694 = vmul.f32 %v1562, %v1653
    %v1695 = vmul.f32 %v1567, %v1658
    %v1696 = vmul.f32 %v1570, %v1663
    %v1697 = vmul.f32 %v1575, %v1668
    %v1698 = vmul.f32 %v1578, %v1673
    %v1699 = vmul.f32 %v1583, %v1678
    %v1700 = vmul.f32 %v1586, %v1683
    %vm1701 = vcmp.gt.f32.partialorder %v1685, 0.0
    %vm1702 = vcmp.gt.f32.partialorder %v1686, 0.0
    %vm1703 = vcmp.gt.f32.partialorder %v1687, 0.0
    %vm1704 = vcmp.gt.f32.partialorder %v1688, 0.0
    %vm1705 = vcmp.gt.f32.partialorder %v1689, 0.0
    %vm1706 = vcmp.gt.f32.partialorder %v1690, 0.0
    %vm1707 = vcmp.gt.f32.partialorder %v1691, 0.0
    %vm1708 = vcmp.gt.f32.partialorder %v1692, 0.0
    %vm1709 = vcmp.gt.f32.partialorder %v1693, 0.0
    %vm1710 = vcmp.gt.f32.partialorder %v1694, 0.0
    %vm1711 = vcmp.gt.f32.partialorder %v1695, 0.0
    %vm1712 = vcmp.gt.f32.partialorder %v1696, 0.0
    %vm1713 = vcmp.gt.f32.partialorder %v1697, 0.0
    %vm1714 = vcmp.gt.f32.partialorder %v1698, 0.0
    %vm1715 = vcmp.gt.f32.partialorder %v1699, 0.0
    %vm1716 = vcmp.gt.f32.partialorder %v1700, 0.0
    %v1717 = vmul.f32 %v1685, 1.442695
    %v1718 = vpow.pop %v1717
    %v1719 = vmul.f32 %v1686, 1.442695
    %v1720 = vpow.pop %v1719
    %v1721 = vmul.f32 %v1687, 1.442695
    %v1722 = vpow.pop %v1721
    %v1723 = vmul.f32 %v1688, 1.442695
    %v1724 = vpow.pop %v1723
    %v1725 = vmul.f32 %v1689, 1.442695
    %v1726 = vpow.pop %v1725
    %v1727 = vmul.f32 %v1690, 1.442695
    %v1728 = vpow.pop %v1727
    %v1729 = vmul.f32 %v1691, 1.442695
    %v1730 = vpow.pop %v1729
    %v1731 = vmul.f32 %v1692, 1.442695
    %v1732 = vpow.pop %v1731
    %v1733 = vmul.f32 %v1693, 1.442695
    %v1734 = vpow.pop %v1733
    %v1735 = vmul.f32 %v1694, 1.442695
    %v1736 = vpow.pop %v1735
    %v1737 = vmul.f32 %v1695, 1.442695
    %v1738 = vpow.pop %v1737
    %v1739 = vmul.f32 %v1696, 1.442695
    %v1740 = vpow.pop %v1739
    %v1741 = vmul.f32 %v1697, 1.442695
    %v1742 = vpow.pop %v1741
    %v1743 = vmul.f32 %v1698, 1.442695
    %v1744 = vpow.pop %v1743
    %v1745 = vmul.f32 %v1699, 1.442695
    %v1746 = vpow.pop %v1745
    %v1747 = vmul.f32 %v1700, 1.442695
    %v1748 = vpow.pop %v1747
    %v1749 = vsub.f32 %v1718, 1.0
    %v1750 = vsub.f32 %v1720, 1.0
    %v1751 = vsub.f32 %v1722, 1.0
    %v1752 = vsub.f32 %v1724, 1.0
    %v1753 = vsub.f32 %v1726, 1.0
    %v1754 = vsub.f32 %v1728, 1.0
    %v1755 = vsub.f32 %v1730, 1.0
    %v1756 = vsub.f32 %v1732, 1.0
    %v1757 = vsub.f32 %v1734, 1.0
    %v1758 = vsub.f32 %v1736, 1.0
    %v1759 = vsub.f32 %v1738, 1.0
    %v1760 = vsub.f32 %v1740, 1.0
    %v1761 = vsub.f32 %v1742, 1.0
    %v1762 = vsub.f32 %v1744, 1.0
    %v1763 = vsub.f32 %v1746, 1.0
    %v1764 = vsub.f32 %v1748, 1.0
    %v1765 = vsel %vm1701, %v1685, %v1749
    %v1766 = vsel %vm1702, %v1686, %v1750
    %v1767 = vsel %vm1703, %v1687, %v1751
    %v1768 = vsel %vm1704, %v1688, %v1752
    %v1769 = vsel %vm1705, %v1689, %v1753
    %v1770 = vsel %vm1706, %v1690, %v1754
    %v1771 = vsel %vm1707, %v1691, %v1755
    %v1772 = vsel %vm1708, %v1692, %v1756
    %v1773 = vsel %vm1709, %v1693, %v1757
    %v1774 = vsel %vm1710, %v1694, %v1758
    %v1775 = vsel %vm1711, %v1695, %v1759
    %v1776 = vsel %vm1712, %v1696, %v1760
    %v1777 = vsel %vm1713, %v1697, %v1761
    %v1778 = vsel %vm1714, %v1698, %v1762
    %v1779 = vsel %vm1715, %v1699, %v1763
    %v1780 = vsel %vm1716, %v1700, %v1764
    %1797 = vrot.lane.b32.xlu0 %v1765, 64
    %v1798 = vpop.permute.xlu0 %1797
    %1799 = vrot.lane.b32.xlu0 %v1766, 64
    %v1800 = vpop.permute.xlu0 %1799
    %1801 = vrot.lane.b32.xlu0 %v1767, 64
    %v1802 = vpop.permute.xlu0 %1801
    %1803 = vrot.lane.b32.xlu0 %v1768, 64
    %v1804 = vpop.permute.xlu0 %1803
    %1805 = vrot.lane.b32.xlu0 %v1769, 64
    %v1806 = vpop.permute.xlu0 %1805
    %1807 = vrot.lane.b32.xlu0 %v1770, 64
    %v1808 = vpop.permute.xlu0 %1807
    %1809 = vrot.lane.b32.xlu0 %v1771, 64
    %v1810 = vpop.permute.xlu0 %1809
    %1811 = vrot.lane.b32.xlu0 %v1772, 64
    %v1812 = vpop.permute.xlu0 %1811
    %1813 = vrot.lane.b32.xlu0 %v1773, 64
    %v1814 = vpop.permute.xlu0 %1813
    %1815 = vrot.lane.b32.xlu0 %v1774, 64
    %v1816 = vpop.permute.xlu0 %1815
    %1817 = vrot.lane.b32.xlu0 %v1775, 64
    %v1818 = vpop.permute.xlu0 %1817
    %1819 = vrot.lane.b32.xlu0 %v1776, 64
    %v1820 = vpop.permute.xlu0 %1819
    %1821 = vrot.lane.b32.xlu0 %v1777, 64
    %v1822 = vpop.permute.xlu0 %1821
    %1823 = vrot.lane.b32.xlu0 %v1778, 64
    %v1824 = vpop.permute.xlu0 %1823
    %1825 = vrot.lane.b32.xlu0 %v1779, 64
    %v1826 = vpop.permute.xlu0 %1825
    %1827 = vrot.lane.b32.xlu0 %v1780, 64
    %v1828 = vpop.permute.xlu0 %1827
    %v1845 = vsel %vm130, %v1256, %v1798
    %v1846 = vsel %vm130, %v1257, %v1800
    %v1847 = vsel %vm130, %v1258, %v1802
    %v1848 = vsel %vm130, %v1259, %v1804
    %v1849 = vsel %vm130, %v1260, %v1806
    %v1850 = vsel %vm130, %v1261, %v1808
    %v1851 = vsel %vm130, %v1262, %v1810
    %v1852 = vsel %vm130, %v1263, %v1812
    %v1853 = vsel %vm130, %v1264, %v1814
    %v1854 = vsel %vm130, %v1265, %v1816
    %v1855 = vsel %vm130, %v1266, %v1818
    %v1856 = vsel %vm130, %v1267, %v1820
    %v1857 = vsel %vm130, %v1268, %v1822
    %v1858 = vsel %vm130, %v1269, %v1824
    %v1859 = vsel %vm130, %v1270, %v1826
    %v1860 = vsel %vm130, %v1271, %v1828
    %v1861 = vpack.c.bf16 %v1846, %v1845
    %v1862 = vpack.c.bf16 %v1848, %v1847
    %v1863 = vpack.c.bf16 %v1850, %v1849
    %v1864 = vpack.c.bf16 %v1852, %v1851
    %v1865 = vpack.c.bf16 %v1854, %v1853
    %v1866 = vpack.c.bf16 %v1856, %v1855
    %v1867 = vpack.c.bf16 %v1858, %v1857
    %v1868 = vpack.c.bf16 %v1860, %v1859
    %v1877 = vunpack.c.l.b16 %v1861
    %v1878 = vunpack.c.h.b16 %v1861
    %v1879 = vunpack.c.l.b16 %v1862
    %v1880 = vunpack.c.h.b16 %v1862
    %v1881 = vunpack.c.l.b16 %v1863
    %v1882 = vunpack.c.h.b16 %v1863
    %v1883 = vunpack.c.l.b16 %v1864
    %v1884 = vunpack.c.h.b16 %v1864
    %v1885 = vunpack.c.l.b16 %v1865
    %v1886 = vunpack.c.h.b16 %v1865
    %v1887 = vunpack.c.l.b16 %v1866
    %v1888 = vunpack.c.h.b16 %v1866
    %v1889 = vunpack.c.l.b16 %v1867
    %v1890 = vunpack.c.h.b16 %v1867
    %v1891 = vunpack.c.l.b16 %v1868
    %v1892 = vunpack.c.h.b16 %v1868
    %v1893 = vpack.c.b16 %v1877, %v1877
    %v1894 = vpack.c.b16 %v1878, %v1878
    %v1895 = vpack.c.b16 %v1879, %v1879
    %v1896 = vpack.c.b16 %v1880, %v1880
    %v1897 = vpack.c.b16 %v1881, %v1881
    %v1898 = vpack.c.b16 %v1882, %v1882
    %v1899 = vpack.c.b16 %v1883, %v1883
    %v1900 = vpack.c.b16 %v1884, %v1884
    %v1901 = vpack.c.b16 %v1885, %v1885
    %v1902 = vpack.c.b16 %v1886, %v1886
    %v1903 = vpack.c.b16 %v1887, %v1887
    %v1904 = vpack.c.b16 %v1888, %v1888
    %v1905 = vpack.c.b16 %v1889, %v1889
    %v1906 = vpack.c.b16 %v1890, %v1890
    %v1907 = vpack.c.b16 %v1891, %v1891
    %v1908 = vpack.c.b16 %v1892, %v1892
    %1925 = vst [vmem:[#allocation5] sm:$0xf] %v1893
    %1926 = vst [vmem:[#allocation5 + $0x4] sm:$0xf] %v1894
    %1927 = vst [vmem:[#allocation5 + $0x8] sm:$0xf] %v1895
    %1928 = vst [vmem:[#allocation5 + $0xc] sm:$0xf] %v1896
    %1929 = vst [vmem:[#allocation5 + $0x10] sm:$0xf] %v1897
    %1930 = vst [vmem:[#allocation5 + $0x14] sm:$0xf] %v1898
    %1931 = vst [vmem:[#allocation5 + $0x18] sm:$0xf] %v1899
    %1932 = vst [vmem:[#allocation5 + $0x1c] sm:$0xf] %v1900
    %1933 = vst [vmem:[#allocation5 + $0x20] sm:$0xf] %v1901
    %1934 = vst [vmem:[#allocation5 + $0x24] sm:$0xf] %v1902
    %1935 = vst [vmem:[#allocation5 + $0x28] sm:$0xf] %v1903
    %1936 = vst [vmem:[#allocation5 + $0x2c] sm:$0xf] %v1904
    %1937 = vst [vmem:[#allocation5 + $0x30] sm:$0xf] %v1905
    %1938 = vst [vmem:[#allocation5 + $0x34] sm:$0xf] %v1906
    %1939 = vst [vmem:[#allocation5 + $0x38] sm:$0xf] %v1907
    %1940 = vst [vmem:[#allocation5 + $0x3c] sm:$0xf] %v1908
    // Predicated region
    $region30: #{tpu_custom_call.1} parent=1 // pred_check
      _
    $region31: #{tpu_custom_call.1} parent=1 // pred_check_branch
      %1942 = sbr.rel (0) target = $region33
    $region32: #{tpu_custom_call.1} parent=1 // pred_region
      %s1944 = ssub.s32 1024, 1024
      %1945 = vsyncadd [#allocation4], %s1944
      %s1946 = sshll.u32 [#allocation5], 4
      %s1947 = int_to_ptr.vmem [resolvable:$true] %s1946
      %1952 = dma.vmem_to_hbm [thread:$0]  %s1947, 1024, %s6, [#allocation4], 64, 64, 4
    $region33: #{tpu_custom_call.1} parent=1 // pred_fallthru
      _
    // Predicated region
    $region34: #{tpu_custom_call.1} parent=1 // pred_check
      _
    $region35: #{tpu_custom_call.1} parent=1 // pred_check_branch
      %1954 = sbr.rel (0) target = $region37
    $region36: #{tpu_custom_call.1} parent=1 // pred_region
      %1955 = dma.done [#allocation4], 1024
    $region37: #{tpu_custom_call.1} parent=1 // pred_fallthru
      _
    %1956 = vsyncpa [#allocation3], 1
    %1957 = vsyncpa [#allocation4], 1

</llo_original>
